<compile_context>
chip_gen: v7x
topology: tpu7x:2x2x1
jax: 0.10.0
libtpu: 0.0.40
codegen_flags: <defaults>
</compile_context>

<pallas_src>
import jax
import jax.numpy as jnp
from jax.experimental import pallas as pl
from jax.experimental.pallas import tpu as pltpu

LEAKY_SLOPE = 0.01               # nn.LeakyReLU default negative_slope
BN_EPS = 1e-5                    # nn.BatchNorm3d default eps
_VMEM_LIMIT = 48 * 1024 * 1024   # stay under v7x's 64 MiB physical VMEM


def metric_block(x_ndhwc, w_oidhw, bias, gamma, beta):
    """Conv3d(3,1,1) + BatchNorm3d(batch stats) + LeakyReLU (channels-last I/O).

    x_ndhwc : (N, D, H, W, Cin) f32,  w_oidhw : (Cout, Cin, 3, 3, 3) f32 (PyTorch),
    bias/gamma/beta : (Cout,).  Returns (N, D, H, W, Cout) f32.
    """
    del bias  # (conv_out + b) - mean(conv_out + b) == conv_out - mean(conv_out)

    N, D, H, W, Cin = x_ndhwc.shape
    Cout = w_oidhw.shape[0]
    HW = H * W
    M = N * D * HW
    Hp, Wp = H + 2, W + 2
    K = 27 * Cin

    # ---- glue: zero-pad (padding=1) and fold the weight taps into K ---------
    # TODO(synk): fuse the 1-pixel halo into the kernel (clamped index_map +
    # masking) to avoid materializing the padded activation in HBM.
    x_pad = jnp.pad(x_ndhwc, ((0, 0), (1, 1), (1, 1), (1, 1), (0, 0)))
    # weight rows ordered (kd, kh, kw, cin) to match the in-kernel im2col order.
    w_col = jnp.transpose(w_oidhw, (2, 3, 4, 1, 0)).reshape(K, Cout)
    w_col = w_col.astype(jnp.float32)

    # ======================= pass 1: conv + BN partials ======================
    def conv_stats_kernel(x0_ref, x1_ref, x2_ref, w_ref, y_ref, s_ref, q_ref):
        # x{kd}_ref: (H+2, W+2, Cin) padded depth slice d+kd   (N, D squeezed)
        # w_ref    : (27*Cin, Cout)
        # y_ref    : (H*W, Cout) conv output tile
        # s_ref/q_ref : (1, Cout) per-tile sum / sum-of-squares
        xs = (x0_ref, x1_ref, x2_ref)
        patches = []
        for kd in range(3):
            blk = xs[kd][...]                                   # (Hp, Wp, Cin)
            for kh in range(3):
                for kw in range(3):
                    patches.append(
                        jax.lax.slice(blk, (kh, kw, 0), (kh + H, kw + W, Cin)))
        col3 = jnp.concatenate(patches, axis=2)                 # (H, W, 27*Cin)
        col = col3.reshape(HW, K)                               # im2col tile
        # Single MXU matmul with contraction depth K = 27*Cin (vs 27 K=Cin dots).
        # TODO(synk): optionally cast col/w to bf16 (f32 accumulate) for native
        # MXU throughput if a looser tolerance is acceptable.
        y = jnp.dot(col, w_ref[...], preferred_element_type=jnp.float32)
        y_ref[...] = y
        s_ref[...] = jnp.sum(y, axis=0, keepdims=True)
        q_ref[...] = jnp.sum(y * y, axis=0, keepdims=True)

    def x_view_spec(kd):
        # Same padded array, three depth-shifted views (block size 1 on D+2 axis).
        return pl.BlockSpec((None, None, Hp, Wp, Cin),
                            lambda n, d: (n, d + kd, 0, 0, 0))

    # TODO(synk): output lane width is Cout (<128); packing W*Cout onto the lane
    # axis would require an extra per-tile relayout of the MXU result, so the
    # (H*W, Cout) slab layout is kept.
    y1, psum, psumsq = pl.pallas_call(
        conv_stats_kernel,
        grid=(N, D),
        in_specs=[
            x_view_spec(0), x_view_spec(1), x_view_spec(2),
            pl.BlockSpec((K, Cout), lambda n, d: (0, 0)),
        ],
        out_specs=(
            pl.BlockSpec((None, None, HW, Cout), lambda n, d: (n, d, 0, 0)),
            pl.BlockSpec((None, None, 1, Cout), lambda n, d: (n, d, 0, 0)),
            pl.BlockSpec((None, None, 1, Cout), lambda n, d: (n, d, 0, 0)),
        ),
        out_shape=(
            jax.ShapeDtypeStruct((N, D, HW, Cout), jnp.float32),
            jax.ShapeDtypeStruct((N, D, 1, Cout), jnp.float32),
            jax.ShapeDtypeStruct((N, D, 1, Cout), jnp.float32),
        ),
        compiler_params=pltpu.CompilerParams(
            dimension_semantics=("parallel", "parallel"),
            vmem_limit_bytes=_VMEM_LIMIT),
    )(x_pad, x_pad, x_pad, w_col)

    # ---- tiny combine of per-tile partials -> folded BN scale/shift (f32) ---
    total = jnp.sum(psum, axis=(0, 1, 2))                 # (Cout,)
    total_sq = jnp.sum(psumsq, axis=(0, 1, 2))            # (Cout,)
    mean = total / M
    var = jnp.maximum(total_sq / M - mean * mean, 0.0)    # biased batch variance
    scale = gamma * jax.lax.rsqrt(var + BN_EPS)
    shift = beta - mean * scale

    # ==================== pass 2: scale/shift + LeakyReLU ====================
    def bn_act_kernel(y_ref, sc_ref, sh_ref, o_ref):
        t = y_ref[...] * sc_ref[...] + sh_ref[...]
        o_ref[...] = jnp.where(t > 0, t, LEAKY_SLOPE * t)

    y2d = y1.reshape(M, Cout)
    tm = HW
    if tm % 8 != 0:
        tm = M                       # single full block (always layout-legal)
    else:
        # grow the row tile: biggest tile that comfortably fits VMEM wins.
        while M % (2 * tm) == 0 and 2 * tm * Cout * 4 <= (4 << 20):
            tm *= 2

    out2d = pl.pallas_call(
        bn_act_kernel,
        grid=(M // tm,),
        in_specs=[
            pl.BlockSpec((tm, Cout), lambda i: (i, 0)),
            pl.BlockSpec((1, Cout), lambda i: (0, 0)),
            pl.BlockSpec((1, Cout), lambda i: (0, 0)),
        ],
        out_specs=pl.BlockSpec((tm, Cout), lambda i: (i, 0)),
        out_shape=jax.ShapeDtypeStruct((M, Cout), jnp.float32),
        compiler_params=pltpu.CompilerParams(
            dimension_semantics=("parallel",),
            vmem_limit_bytes=_VMEM_LIMIT),
    )(y2d, scale.reshape(1, Cout).astype(jnp.float32),
      shift.reshape(1, Cout).astype(jnp.float32))

    return out2d.reshape(N, D, H, W, Cout)


def _reference(x_ndhwc, w_oidhw, bias, gamma, beta):
    """Pure-JAX reference mirroring the PyTorch forward (NCDHW conv + BN + LeakyReLU)."""
    x = jnp.transpose(x_ndhwc, (0, 4, 1, 2, 3))  # NDHWC -> NCDHW
    y = jax.lax.conv_general_dilated(
        x, w_oidhw, window_strides=(1, 1, 1),
        padding=((1, 1), (1, 1), (1, 1)),
        dimension_numbers=("NCDHW", "OIDHW", "NCDHW"),
        precision=jax.lax.Precision.HIGHEST)
    y = y + bias[None, :, None, None, None]
    mean = jnp.mean(y, axis=(0, 2, 3, 4), keepdims=True)
    var = jnp.mean((y - mean) ** 2, axis=(0, 2, 3, 4), keepdims=True)
    y = (y - mean) * jax.lax.rsqrt(var + BN_EPS)
    y = y * gamma[None, :, None, None, None] + beta[None, :, None, None, None]
    y = jnp.where(y > 0, y, LEAKY_SLOPE * y)
    return jnp.transpose(y, (0, 2, 3, 4, 1))  # back to NDHWC


if __name__ == "__main__":
    # Small shapes consistent with a 5-D cost-volume input to MetricBlock.
    N, Cin, Cout, D, H, W = 2, 4, 8, 4, 8, 8

    key = jax.random.PRNGKey(0)
    kx, kw, kb, kg, kbe = jax.random.split(key, 5)
    x = jax.random.normal(kx, (N, D, H, W, Cin), jnp.float32)
    w = jax.random.normal(kw, (Cout, Cin, 3, 3, 3), jnp.float32) * 0.1
    b = jax.random.normal(kb, (Cout,), jnp.float32) * 0.1
    gamma = 1.0 + 0.1 * jax.random.normal(kg, (Cout,), jnp.float32)
    beta = 0.1 * jax.random.normal(kbe, (Cout,), jnp.float32)

    out = jax.jit(metric_block)(x, w, b, gamma, beta)
    out = jax.block_until_ready(out)

    ref = _reference(x, w, b, gamma, beta)
    assert out.shape == (N, D, H, W, Cout)
    assert jnp.allclose(out, ref, rtol=1e-3, atol=1e-3), "mismatch vs reference"

    print("KERNEL_OK")
</pallas_src>

<mosaic_0001>
module attributes {stable_mosaic.version = 11 : i64} {
  func.func @conv_stats_kernel(%arg0: i32, %arg1: i32, %arg2: memref<1x1x10x10x4xf32, #tpu.memory_space<vmem>>, %arg3: memref<1x1x10x10x4xf32, #tpu.memory_space<vmem>>, %arg4: memref<1x1x10x10x4xf32, #tpu.memory_space<vmem>>, %arg5: memref<108x8xf32, #tpu.memory_space<vmem>>, %arg6: memref<1x1x64x8xf32, #tpu.memory_space<vmem>>, %arg7: memref<1x1x1x8xf32, #tpu.memory_space<vmem>>, %arg8: memref<1x1x1x8xf32, #tpu.memory_space<vmem>>) attributes {dimension_semantics = [#tpu.dimension_semantics<parallel>, #tpu.dimension_semantics<parallel>], iteration_bounds = array<i64: 2, 4>, scalar_prefetch = 0 : i64, scratch_operands = 0 : i64, tpu.core_type = #tpu.core_type<tc>, window_params = [{transform_indices = @transform_0, window_bounds = array<i64: 1, 1, 10, 10, 4>}, {transform_indices = @transform_1, window_bounds = array<i64: 1, 1, 10, 10, 4>}, {transform_indices = @transform_2, window_bounds = array<i64: 1, 1, 10, 10, 4>}, {pipeline_mode = #tpu.pipeline_mode<synchronous>, transform_indices = @transform_3, window_bounds = array<i64: 108, 8>}, {transform_indices = @transform_4, window_bounds = array<i64: 1, 1, 64, 8>}, {transform_indices = @transform_5, window_bounds = array<i64: 1, 1, 1, 8>}, {transform_indices = @transform_6, window_bounds = array<i64: 1, 1, 1, 8>}]} {
    %c0 = arith.constant 0 : index
    %c0_0 = arith.constant 0 : index
    %c0_1 = arith.constant 0 : index
    %c0_2 = arith.constant 0 : index
    %c0_3 = arith.constant 0 : index
    %0 = vector.load %arg2[%c0, %c0_0, %c0_1, %c0_2, %c0_3] : memref<1x1x10x10x4xf32, #tpu.memory_space<vmem>>, vector<1x1x10x10x4xf32>
    %1 = vector.shape_cast %0 : vector<1x1x10x10x4xf32> to vector<10x10x4xf32>
    %2 = vector.extract_strided_slice %1 {offsets = [0, 0, 0], sizes = [8, 8, 4], strides = [1, 1, 1]} : vector<10x10x4xf32> to vector<8x8x4xf32>
    %3 = vector.extract_strided_slice %1 {offsets = [0, 1, 0], sizes = [8, 8, 4], strides = [1, 1, 1]} : vector<10x10x4xf32> to vector<8x8x4xf32>
    %4 = vector.extract_strided_slice %1 {offsets = [0, 2, 0], sizes = [8, 8, 4], strides = [1, 1, 1]} : vector<10x10x4xf32> to vector<8x8x4xf32>
    %5 = vector.extract_strided_slice %1 {offsets = [1, 0, 0], sizes = [8, 8, 4], strides = [1, 1, 1]} : vector<10x10x4xf32> to vector<8x8x4xf32>
    %6 = vector.extract_strided_slice %1 {offsets = [1, 1, 0], sizes = [8, 8, 4], strides = [1, 1, 1]} : vector<10x10x4xf32> to vector<8x8x4xf32>
    %7 = vector.extract_strided_slice %1 {offsets = [1, 2, 0], sizes = [8, 8, 4], strides = [1, 1, 1]} : vector<10x10x4xf32> to vector<8x8x4xf32>
    %8 = vector.extract_strided_slice %1 {offsets = [2, 0, 0], sizes = [8, 8, 4], strides = [1, 1, 1]} : vector<10x10x4xf32> to vector<8x8x4xf32>
    %9 = vector.extract_strided_slice %1 {offsets = [2, 1, 0], sizes = [8, 8, 4], strides = [1, 1, 1]} : vector<10x10x4xf32> to vector<8x8x4xf32>
    %10 = vector.extract_strided_slice %1 {offsets = [2, 2, 0], sizes = [8, 8, 4], strides = [1, 1, 1]} : vector<10x10x4xf32> to vector<8x8x4xf32>
    %c0_4 = arith.constant 0 : index
    %c0_5 = arith.constant 0 : index
    %c0_6 = arith.constant 0 : index
    %c0_7 = arith.constant 0 : index
    %c0_8 = arith.constant 0 : index
    %11 = vector.load %arg3[%c0_4, %c0_5, %c0_6, %c0_7, %c0_8] : memref<1x1x10x10x4xf32, #tpu.memory_space<vmem>>, vector<1x1x10x10x4xf32>
    %12 = vector.shape_cast %11 : vector<1x1x10x10x4xf32> to vector<10x10x4xf32>
    %13 = vector.extract_strided_slice %12 {offsets = [0, 0, 0], sizes = [8, 8, 4], strides = [1, 1, 1]} : vector<10x10x4xf32> to vector<8x8x4xf32>
    %14 = vector.extract_strided_slice %12 {offsets = [0, 1, 0], sizes = [8, 8, 4], strides = [1, 1, 1]} : vector<10x10x4xf32> to vector<8x8x4xf32>
    %15 = vector.extract_strided_slice %12 {offsets = [0, 2, 0], sizes = [8, 8, 4], strides = [1, 1, 1]} : vector<10x10x4xf32> to vector<8x8x4xf32>
    %16 = vector.extract_strided_slice %12 {offsets = [1, 0, 0], sizes = [8, 8, 4], strides = [1, 1, 1]} : vector<10x10x4xf32> to vector<8x8x4xf32>
    %17 = vector.extract_strided_slice %12 {offsets = [1, 1, 0], sizes = [8, 8, 4], strides = [1, 1, 1]} : vector<10x10x4xf32> to vector<8x8x4xf32>
    %18 = vector.extract_strided_slice %12 {offsets = [1, 2, 0], sizes = [8, 8, 4], strides = [1, 1, 1]} : vector<10x10x4xf32> to vector<8x8x4xf32>
    %19 = vector.extract_strided_slice %12 {offsets = [2, 0, 0], sizes = [8, 8, 4], strides = [1, 1, 1]} : vector<10x10x4xf32> to vector<8x8x4xf32>
    %20 = vector.extract_strided_slice %12 {offsets = [2, 1, 0], sizes = [8, 8, 4], strides = [1, 1, 1]} : vector<10x10x4xf32> to vector<8x8x4xf32>
    %21 = vector.extract_strided_slice %12 {offsets = [2, 2, 0], sizes = [8, 8, 4], strides = [1, 1, 1]} : vector<10x10x4xf32> to vector<8x8x4xf32>
    %c0_9 = arith.constant 0 : index
    %c0_10 = arith.constant 0 : index
    %c0_11 = arith.constant 0 : index
    %c0_12 = arith.constant 0 : index
    %c0_13 = arith.constant 0 : index
    %22 = vector.load %arg4[%c0_9, %c0_10, %c0_11, %c0_12, %c0_13] : memref<1x1x10x10x4xf32, #tpu.memory_space<vmem>>, vector<1x1x10x10x4xf32>
    %23 = vector.shape_cast %22 : vector<1x1x10x10x4xf32> to vector<10x10x4xf32>
    %24 = vector.extract_strided_slice %23 {offsets = [0, 0, 0], sizes = [8, 8, 4], strides = [1, 1, 1]} : vector<10x10x4xf32> to vector<8x8x4xf32>
    %25 = vector.extract_strided_slice %23 {offsets = [0, 1, 0], sizes = [8, 8, 4], strides = [1, 1, 1]} : vector<10x10x4xf32> to vector<8x8x4xf32>
    %26 = vector.extract_strided_slice %23 {offsets = [0, 2, 0], sizes = [8, 8, 4], strides = [1, 1, 1]} : vector<10x10x4xf32> to vector<8x8x4xf32>
    %27 = vector.extract_strided_slice %23 {offsets = [1, 0, 0], sizes = [8, 8, 4], strides = [1, 1, 1]} : vector<10x10x4xf32> to vector<8x8x4xf32>
    %28 = vector.extract_strided_slice %23 {offsets = [1, 1, 0], sizes = [8, 8, 4], strides = [1, 1, 1]} : vector<10x10x4xf32> to vector<8x8x4xf32>
    %29 = vector.extract_strided_slice %23 {offsets = [1, 2, 0], sizes = [8, 8, 4], strides = [1, 1, 1]} : vector<10x10x4xf32> to vector<8x8x4xf32>
    %30 = vector.extract_strided_slice %23 {offsets = [2, 0, 0], sizes = [8, 8, 4], strides = [1, 1, 1]} : vector<10x10x4xf32> to vector<8x8x4xf32>
    %31 = vector.extract_strided_slice %23 {offsets = [2, 1, 0], sizes = [8, 8, 4], strides = [1, 1, 1]} : vector<10x10x4xf32> to vector<8x8x4xf32>
    %32 = vector.extract_strided_slice %23 {offsets = [2, 2, 0], sizes = [8, 8, 4], strides = [1, 1, 1]} : vector<10x10x4xf32> to vector<8x8x4xf32>
    %33 = tpu.concatenate %2, %3, %4, %5, %6, %7, %8, %9, %10, %13, %14, %15, %16, %17, %18, %19 in 2 : vector<8x8x4xf32>, vector<8x8x4xf32>, vector<8x8x4xf32>, vector<8x8x4xf32>, vector<8x8x4xf32>, vector<8x8x4xf32>, vector<8x8x4xf32>, vector<8x8x4xf32>, vector<8x8x4xf32>, vector<8x8x4xf32>, vector<8x8x4xf32>, vector<8x8x4xf32>, vector<8x8x4xf32>, vector<8x8x4xf32>, vector<8x8x4xf32>, vector<8x8x4xf32> -> vector<8x8x64xf32>
    %34 = tpu.concatenate %20, %21, %24, %25, %26, %27, %28, %29, %30, %31, %32 in 2 : vector<8x8x4xf32>, vector<8x8x4xf32>, vector<8x8x4xf32>, vector<8x8x4xf32>, vector<8x8x4xf32>, vector<8x8x4xf32>, vector<8x8x4xf32>, vector<8x8x4xf32>, vector<8x8x4xf32>, vector<8x8x4xf32>, vector<8x8x4xf32> -> vector<8x8x44xf32>
    %35 = tpu.concatenate %33, %34 in 2 : vector<8x8x64xf32>, vector<8x8x44xf32> -> vector<8x8x108xf32>
    %36 = vector.shape_cast %35 : vector<8x8x108xf32> to vector<64x108xf32>
    %c0_14 = arith.constant 0 : index
    %c0_15 = arith.constant 0 : index
    %37 = vector.load %arg5[%c0_14, %c0_15] : memref<108x8xf32, #tpu.memory_space<vmem>>, vector<108x8xf32>
    %cst = arith.constant dense<0.000000e+00> : vector<64x8xf32>
    %38 = tpu.matmul %36, %37, %cst {dimension_numbers = #tpu.dot_dimension_numbers<[1], [0], [0], [1], [0, 0, 1, 1], [], []>} : vector<64x108xf32>, vector<108x8xf32>, vector<64x8xf32> -> vector<64x8xf32>
    %c0_16 = arith.constant 0 : index
    %c0_17 = arith.constant 0 : index
    %c0_18 = arith.constant 0 : index
    %c0_19 = arith.constant 0 : index
    %39 = vector.load %arg6[%c0_16, %c0_17, %c0_18, %c0_19] : memref<1x1x64x8xf32, #tpu.memory_space<vmem>>, vector<1x1x64x8xf32>
    %40 = vector.shape_cast %39 : vector<1x1x64x8xf32> to vector<64x8xf32>
    %41 = vector.shape_cast %38 : vector<64x8xf32> to vector<1x1x64x8xf32>
    tpu.vector_store %arg6[%c0_16, %c0_17, %c0_18, %c0_19], %41 {strides = array<i32>} : memref<1x1x64x8xf32, #tpu.memory_space<vmem>>, vector<1x1x64x8xf32>,
    %cst_20 = arith.constant dense<0.000000e+00> : vector<8xf32>
    %42 = vector.multi_reduction <add>, %38, %cst_20 [0] : vector<64x8xf32> to vector<8xf32>
    %43 = vector.shape_cast %42 : vector<8xf32> to vector<1x8xf32>
    %c0_21 = arith.constant 0 : index
    %c0_22 = arith.constant 0 : index
    %c0_23 = arith.constant 0 : index
    %c0_24 = arith.constant 0 : index
    %44 = vector.load %arg7[%c0_21, %c0_22, %c0_23, %c0_24] : memref<1x1x1x8xf32, #tpu.memory_space<vmem>>, vector<1x1x1x8xf32>
    %45 = vector.shape_cast %44 : vector<1x1x1x8xf32> to vector<1x8xf32>
    %46 = vector.shape_cast %43 : vector<1x8xf32> to vector<1x1x1x8xf32>
    tpu.vector_store %arg7[%c0_21, %c0_22, %c0_23, %c0_24], %46 {strides = array<i32>} : memref<1x1x1x8xf32, #tpu.memory_space<vmem>>, vector<1x1x1x8xf32>,
    %47 = arith.mulf %38, %38 : vector<64x8xf32>
    %cst_25 = arith.constant dense<0.000000e+00> : vector<8xf32>
    %48 = vector.multi_reduction <add>, %47, %cst_25 [0] : vector<64x8xf32> to vector<8xf32>
    %49 = vector.shape_cast %48 : vector<8xf32> to vector<1x8xf32>
    %c0_26 = arith.constant 0 : index
    %c0_27 = arith.constant 0 : index
    %c0_28 = arith.constant 0 : index
    %c0_29 = arith.constant 0 : index
    %50 = vector.load %arg8[%c0_26, %c0_27, %c0_28, %c0_29] : memref<1x1x1x8xf32, #tpu.memory_space<vmem>>, vector<1x1x1x8xf32>
    %51 = vector.shape_cast %50 : vector<1x1x1x8xf32> to vector<1x8xf32>
    %52 = vector.shape_cast %49 : vector<1x8xf32> to vector<1x1x1x8xf32>
    tpu.vector_store %arg8[%c0_26, %c0_27, %c0_28, %c0_29], %52 {strides = array<i32>} : memref<1x1x1x8xf32, #tpu.memory_space<vmem>>, vector<1x1x1x8xf32>,
    return
  }
  func.func @transform_0(%arg0: i32, %arg1: i32) -> (i32, i32, i32, i32, i32) {
    %c0_i32 = arith.constant 0 : i32
    %0 = arith.addi %arg1, %c0_i32 : i32
    %c0_i32_0 = arith.constant 0 : i32
    %c0_i32_1 = arith.constant 0 : i32
    %c0_i32_2 = arith.constant 0 : i32
    %c0_i32_3 = arith.constant 0 : i32
    return %arg0, %0, %c0_i32_0, %c0_i32_1, %c0_i32_2 : i32, i32, i32, i32, i32
  }
  func.func @transform_1(%arg0: i32, %arg1: i32) -> (i32, i32, i32, i32, i32) {
    %c1_i32 = arith.constant 1 : i32
    %0 = arith.addi %arg1, %c1_i32 : i32
    %c0_i32 = arith.constant 0 : i32
    %c0_i32_0 = arith.constant 0 : i32
    %c0_i32_1 = arith.constant 0 : i32
    %c0_i32_2 = arith.constant 0 : i32
    return %arg0, %0, %c0_i32, %c0_i32_0, %c0_i32_1 : i32, i32, i32, i32, i32
  }
  func.func @transform_2(%arg0: i32, %arg1: i32) -> (i32, i32, i32, i32, i32) {
    %c2_i32 = arith.constant 2 : i32
    %0 = arith.addi %arg1, %c2_i32 : i32
    %c0_i32 = arith.constant 0 : i32
    %c0_i32_0 = arith.constant 0 : i32
    %c0_i32_1 = arith.constant 0 : i32
    %c0_i32_2 = arith.constant 0 : i32
    return %arg0, %0, %c0_i32, %c0_i32_0, %c0_i32_1 : i32, i32, i32, i32, i32
  }
  func.func @transform_3(%arg0: i32, %arg1: i32) -> (i32, i32) {
    %c0_i32 = arith.constant 0 : i32
    %c0_i32_0 = arith.constant 0 : i32
    %c0_i32_1 = arith.constant 0 : i32
    return %c0_i32, %c0_i32_0 : i32, i32
  }
  func.func @transform_4(%arg0: i32, %arg1: i32) -> (i32, i32, i32, i32) {
    %c0_i32 = arith.constant 0 : i32
    %c0_i32_0 = arith.constant 0 : i32
    %c0_i32_1 = arith.constant 0 : i32
    return %arg0, %arg1, %c0_i32, %c0_i32_0 : i32, i32, i32, i32
  }
  func.func @transform_5(%arg0: i32, %arg1: i32) -> (i32, i32, i32, i32) {
    %c0_i32 = arith.constant 0 : i32
    %c0_i32_0 = arith.constant 0 : i32
    %c0_i32_1 = arith.constant 0 : i32
    return %arg0, %arg1, %c0_i32, %c0_i32_0 : i32, i32, i32, i32
  }
  func.func @transform_6(%arg0: i32, %arg1: i32) -> (i32, i32, i32, i32) {
    %c0_i32 = arith.constant 0 : i32
    %c0_i32_0 = arith.constant 0 : i32
    %c0_i32_1 = arith.constant 0 : i32
    return %arg0, %arg1, %c0_i32, %c0_i32_0 : i32, i32, i32, i32
  }
}

module attributes {stable_mosaic.version = 11 : i64} {
  func.func @bn_act_kernel(%arg0: i32, %arg1: memref<512x8xf32, #tpu.memory_space<vmem>>, %arg2: memref<1x8xf32, #tpu.memory_space<vmem>>, %arg3: memref<1x8xf32, #tpu.memory_space<vmem>>, %arg4: memref<512x8xf32, #tpu.memory_space<vmem>>) attributes {dimension_semantics = [#tpu.dimension_semantics<parallel>], iteration_bounds = array<i64: 1>, scalar_prefetch = 0 : i64, scratch_operands = 0 : i64, tpu.core_type = #tpu.core_type<tc>, window_params = [{transform_indices = @transform_0, window_bounds = array<i64: 512, 8>}, {pipeline_mode = #tpu.pipeline_mode<synchronous>, transform_indices = @transform_1, window_bounds = array<i64: 1, 8>}, {pipeline_mode = #tpu.pipeline_mode<synchronous>, transform_indices = @transform_2, window_bounds = array<i64: 1, 8>}, {transform_indices = @transform_3, window_bounds = array<i64: 512, 8>}]} {
    %c0 = arith.constant 0 : index
    %c0_0 = arith.constant 0 : index
    %0 = vector.load %arg1[%c0, %c0_0] : memref<512x8xf32, #tpu.memory_space<vmem>>, vector<512x8xf32>
    %c0_1 = arith.constant 0 : index
    %c0_2 = arith.constant 0 : index
    %1 = vector.load %arg2[%c0_1, %c0_2] : memref<1x8xf32, #tpu.memory_space<vmem>>, vector<1x8xf32>
    %2 = vector.broadcast %1 : vector<1x8xf32> to vector<512x8xf32>
    %3 = arith.mulf %0, %2 : vector<512x8xf32>
    %c0_3 = arith.constant 0 : index
    %c0_4 = arith.constant 0 : index
    %4 = vector.load %arg3[%c0_3, %c0_4] : memref<1x8xf32, #tpu.memory_space<vmem>>, vector<1x8xf32>
    %5 = vector.broadcast %4 : vector<1x8xf32> to vector<512x8xf32>
    %6 = arith.addf %3, %5 : vector<512x8xf32>
    %cst = arith.constant 0.000000e+00 : f32
    %7 = vector.broadcast %cst : f32 to vector<512x8xf32>
    %8 = arith.cmpf ogt, %6, %7 : vector<512x8xf32>
    %cst_5 = arith.constant 0.00999999977 : f32
    %9 = vector.broadcast %cst_5 : f32 to vector<512x8xf32>
    %10 = arith.mulf %9, %6 : vector<512x8xf32>
    %11 = arith.select %8, %6, %10 : vector<512x8xi1>, vector<512x8xf32>
    %c0_6 = arith.constant 0 : index
    %c0_7 = arith.constant 0 : index
    %12 = vector.load %arg4[%c0_6, %c0_7] : memref<512x8xf32, #tpu.memory_space<vmem>>, vector<512x8xf32>
    tpu.vector_store %arg4[%c0_6, %c0_7], %11 {strides = array<i32>} : memref<512x8xf32, #tpu.memory_space<vmem>>, vector<512x8xf32>,
    return
  }
  func.func @transform_0(%arg0: i32) -> (i32, i32) {
    %c0_i32 = arith.constant 0 : i32
    %c0_i32_0 = arith.constant 0 : i32
    return %arg0, %c0_i32 : i32, i32
  }
  func.func @transform_1(%arg0: i32) -> (i32, i32) {
    %c0_i32 = arith.constant 0 : i32
    %c0_i32_0 = arith.constant 0 : i32
    %c0_i32_1 = arith.constant 0 : i32
    return %c0_i32, %c0_i32_0 : i32, i32
  }
  func.func @transform_2(%arg0: i32) -> (i32, i32) {
    %c0_i32 = arith.constant 0 : i32
    %c0_i32_0 = arith.constant 0 : i32
    %c0_i32_1 = arith.constant 0 : i32
    return %c0_i32, %c0_i32_0 : i32, i32
  }
  func.func @transform_3(%arg0: i32) -> (i32, i32) {
    %c0_i32 = arith.constant 0 : i32
    %c0_i32_0 = arith.constant 0 : i32
    return %arg0, %c0_i32 : i32, i32
  }
}

</mosaic_0001>

<llo_original>
// kernel: metric_block.2
$region0: #{metric_block.2}
  #allocation0 [shape = 'u32[]', space=smem, size = 0x4, offset = 0x4, fixed_abs, tag = 'smem constant byte address 0x4 - core index']
  #allocation1 [shape = 'u32[144,128]{1,0:T(1,128)}', space=vmem, size = 0x12000, scoped, tag = 'internal scratch']
  %s0 = inlined_call_operand.vmem [shape: f32[2,6,10,10,4], index: 0, kind: input, shape index: {}, may-alias: {0,1,2}]
  %s1 = inlined_call_operand.vmem [shape: f32[2,6,10,10,4], index: 1, kind: input, shape index: {}, may-alias: {0,1,2}]
  %s2 = inlined_call_operand.vmem [shape: f32[2,6,10,10,4], index: 2, kind: input, shape index: {}, may-alias: {0,1,2}]
  %s3 = inlined_call_operand.vmem [shape: f32[108,8], index: 3, kind: input, shape index: {}]
  %s4 = inlined_call_operand.vmem [shape: f32[2,4,64,8], index: 4, kind: output, shape index: {0}]
  %s5 = inlined_call_operand.vmem [shape: f32[2,4,1,8], index: 5, kind: output, shape index: {1}]
  %s6 = inlined_call_operand.vmem [shape: f32[2,4,1,8], index: 6, kind: output, shape index: {2}]
  %7 = xla_tuple %s4, %s5, %s6
  %s8 = sld [smem:[#allocation0]]
  $region65: #{metric_block.2} parent=0
    _
  %s10 = ssub.s32 1, %s8
  %s11 = scalar_select 0, %s10, %s8
  loop: start=0, step=1, limit=10
  $region2: #{metric_block.2} parent=0 // loop_pre_header
    _
  $region3: #{metric_block.2} parent=0 // loop_header
    %s13 = sphi 0, %s17
    %p14 = scmp.ge.s32.totalorder %s13, 10
    %s20 = sphi 0, %s32
    %s21 = sphi 0, %s28
    %s22 = sphi 0, %s20
    %s23 = sphi 0, %s21
    %s24 = sphi 0, %s22
    %s25 = sphi 0, %s23
    %s37 = sphi 0, %s39
    %s40 = sphi 0, %s37
    %s41 = sphi 0, %s40
    %s57 = sphi 0, %s41
    %s67 = sphi 0, %s69
    %s70 = sphi 0, %s67
    %s71 = sphi 0, %s70
    %s87 = sphi 0, %s71
    %s97 = sphi 0, %s99
    %s100 = sphi 0, %s97
    %s101 = sphi 0, %s100
    %s117 = sphi 0, %s101
    %s121 = sphi 0, %s121
    %s123 = sphi 0, %s121
    %s124 = sphi 0, %s123
    %s138 = sphi 0, %s124
    %s146 = sphi 0, %s148
    %s149 = sphi 0, %s146
    %s150 = sphi 0, %s149
    %s166 = sphi 0, %s150
    %s174 = sphi 0, %s176
    %s177 = sphi 0, %s174
    %s178 = sphi 0, %s177
    %s194 = sphi 0, %s178
    %s202 = sphi 0, %s204
    %s205 = sphi 0, %s202
    %s206 = sphi 0, %s205
    %s222 = sphi 0, %s206
  $region4: #{metric_block.2} parent=0 // loop_header_branch
    %16 = sbr.rel (%p14) target = $region8
  $region5: #{metric_block.2} parent=0 // loop_body
    %s18 = ssub.s32 %s13, 1
    %s19 = ssub.s32 %s13, 2
    %s26 = sadd.s32 1, %s21
    %p27 = scmp.ge.s32.totalorder %s26, 4
    %s28 = scalar_select %p27, 0, %s26
    %s29 = sadd.s32 1, %s20
    %s30 = scalar_select %p27, %s29, %s20
    %p31 = scmp.ge.s32.totalorder %s30, 2
    %s32 = scalar_select %p31, 0, %s30
    %s33 = ssub.s32 %s20, %s32
    %s34 = ssub.s32 %s21, %s28
    %s35 = sor.u32 %s33, %s34
    %p36 = scmp.eq.s32.totalorder %s35, 0
    %s38 = sadd.s32 %s37, 1
    %s39 = scalar_select %p36, %s37, %s38
    %p42 = pneg %p36
    %p43 = scmp.eq.s32.totalorder %s13, 7
    %p44 = por %p42, %p43
    %p45 = scmp.ne.s32.totalorder %s37, %s40
    %p46 = scmp.eq.s32.totalorder %s13, 0
    %p47 = por %p45, %p46
    %p48 = scmp.ne.s32.totalorder %s37, %s40
    %p49 = scmp.eq.s32.totalorder %s18, 7
    %p50 = por %p48, %p49
    %p51 = scmp.ne.s32.totalorder %s40, %s41
    %p52 = scmp.eq.s32.totalorder %s18, 0
    %p53 = por %p51, %p52
    %p54 = scmp.ne.s32.totalorder %s40, %s41
    %p55 = scmp.eq.s32.totalorder %s19, 7
    %p56 = por %p54, %p55
    %p58 = scmp.ne.s32.totalorder %s41, %s57
    %p59 = scmp.eq.s32.totalorder %s19, 0
    %p60 = por %p58, %p59
    %s61 = sadd.s32 %s21, 1
    %s62 = sadd.s32 %s28, 1
    %s63 = ssub.s32 %s20, %s32
    %s64 = ssub.s32 %s61, %s62
    %s65 = sor.u32 %s63, %s64
    %p66 = scmp.eq.s32.totalorder %s65, 0
    %s68 = sadd.s32 %s67, 1
    %s69 = scalar_select %p66, %s67, %s68
    %p72 = pneg %p66
    %p73 = scmp.eq.s32.totalorder %s13, 7
    %p74 = por %p72, %p73
    %p75 = scmp.ne.s32.totalorder %s67, %s70
    %p76 = scmp.eq.s32.totalorder %s13, 0
    %p77 = por %p75, %p76
    %p78 = scmp.ne.s32.totalorder %s67, %s70
    %p79 = scmp.eq.s32.totalorder %s18, 7
    %p80 = por %p78, %p79
    %p81 = scmp.ne.s32.totalorder %s70, %s71
    %p82 = scmp.eq.s32.totalorder %s18, 0
    %p83 = por %p81, %p82
    %p84 = scmp.ne.s32.totalorder %s70, %s71
    %p85 = scmp.eq.s32.totalorder %s19, 7
    %p86 = por %p84, %p85
    %p88 = scmp.ne.s32.totalorder %s71, %s87
    %p89 = scmp.eq.s32.totalorder %s19, 0
    %p90 = por %p88, %p89
    %s91 = sadd.s32 %s21, 2
    %s92 = sadd.s32 %s28, 2
    %s93 = ssub.s32 %s20, %s32
    %s94 = ssub.s32 %s91, %s92
    %s95 = sor.u32 %s93, %s94
    %p96 = scmp.eq.s32.totalorder %s95, 0
    %s98 = sadd.s32 %s97, 1
    %s99 = scalar_select %p96, %s97, %s98
    %p102 = pneg %p96
    %p103 = scmp.eq.s32.totalorder %s13, 7
    %p104 = por %p102, %p103
    %p105 = scmp.ne.s32.totalorder %s97, %s100
    %p106 = scmp.eq.s32.totalorder %s13, 0
    %p107 = por %p105, %p106
    %p108 = scmp.ne.s32.totalorder %s97, %s100
    %p109 = scmp.eq.s32.totalorder %s18, 7
    %p110 = por %p108, %p109
    %p111 = scmp.ne.s32.totalorder %s100, %s101
    %p112 = scmp.eq.s32.totalorder %s18, 0
    %p113 = por %p111, %p112
    %p114 = scmp.ne.s32.totalorder %s100, %s101
    %p115 = scmp.eq.s32.totalorder %s19, 7
    %p116 = por %p114, %p115
    %p118 = scmp.ne.s32.totalorder %s101, %s117
    %p119 = scmp.eq.s32.totalorder %s19, 0
    %p120 = por %p118, %p119
    %s122 = sadd.s32 %s121, 1
    %p125 = scmp.eq.s32.totalorder %s13, 7
    %p126 = scmp.ne.s32.totalorder %s121, %s123
    %p127 = scmp.eq.s32.totalorder %s13, 0
    %p128 = por %p126, %p127
    %p129 = scmp.ne.s32.totalorder %s121, %s123
    %p130 = scmp.eq.s32.totalorder %s18, 7
    %p131 = por %p129, %p130
    %p132 = scmp.ne.s32.totalorder %s123, %s124
    %p133 = scmp.eq.s32.totalorder %s18, 0
    %p134 = por %p132, %p133
    %p135 = scmp.ne.s32.totalorder %s123, %s124
    %p136 = scmp.eq.s32.totalorder %s19, 7
    %p137 = por %p135, %p136
    %p139 = scmp.ne.s32.totalorder %s124, %s138
    %p140 = scmp.eq.s32.totalorder %s19, 0
    %p141 = por %p139, %p140
    %s142 = ssub.s32 %s20, %s32
    %s143 = ssub.s32 %s21, %s28
    %s144 = sor.u32 %s142, %s143
    %p145 = scmp.eq.s32.totalorder %s144, 0
    %s147 = sadd.s32 %s146, 1
    %s148 = scalar_select %p145, %s146, %s147
    %p151 = pneg %p145
    %p152 = scmp.eq.s32.totalorder %s13, 7
    %p153 = por %p151, %p152
    %p154 = scmp.ne.s32.totalorder %s146, %s149
    %p155 = scmp.eq.s32.totalorder %s13, 0
    %p156 = por %p154, %p155
    %p157 = scmp.ne.s32.totalorder %s146, %s149
    %p158 = scmp.eq.s32.totalorder %s18, 7
    %p159 = por %p157, %p158
    %p160 = scmp.ne.s32.totalorder %s149, %s150
    %p161 = scmp.eq.s32.totalorder %s18, 0
    %p162 = por %p160, %p161
    %p163 = scmp.ne.s32.totalorder %s149, %s150
    %p164 = scmp.eq.s32.totalorder %s19, 7
    %p165 = por %p163, %p164
    %p167 = scmp.ne.s32.totalorder %s150, %s166
    %p168 = scmp.eq.s32.totalorder %s19, 0
    %p169 = por %p167, %p168
    %s170 = ssub.s32 %s20, %s32
    %s171 = ssub.s32 %s21, %s28
    %s172 = sor.u32 %s170, %s171
    %p173 = scmp.eq.s32.totalorder %s172, 0
    %s175 = sadd.s32 %s174, 1
    %s176 = scalar_select %p173, %s174, %s175
    %p179 = pneg %p173
    %p180 = scmp.eq.s32.totalorder %s13, 7
    %p181 = por %p179, %p180
    %p182 = scmp.ne.s32.totalorder %s174, %s177
    %p183 = scmp.eq.s32.totalorder %s13, 0
    %p184 = por %p182, %p183
    %p185 = scmp.ne.s32.totalorder %s174, %s177
    %p186 = scmp.eq.s32.totalorder %s18, 7
    %p187 = por %p185, %p186
    %p188 = scmp.ne.s32.totalorder %s177, %s178
    %p189 = scmp.eq.s32.totalorder %s18, 0
    %p190 = por %p188, %p189
    %p191 = scmp.ne.s32.totalorder %s177, %s178
    %p192 = scmp.eq.s32.totalorder %s19, 7
    %p193 = por %p191, %p192
    %p195 = scmp.ne.s32.totalorder %s178, %s194
    %p196 = scmp.eq.s32.totalorder %s19, 0
    %p197 = por %p195, %p196
    %s198 = ssub.s32 %s20, %s32
    %s199 = ssub.s32 %s21, %s28
    %s200 = sor.u32 %s198, %s199
    %p201 = scmp.eq.s32.totalorder %s200, 0
    %s203 = sadd.s32 %s202, 1
    %s204 = scalar_select %p201, %s202, %s203
    %p207 = pneg %p201
    %p208 = scmp.eq.s32.totalorder %s13, 7
    %p209 = por %p207, %p208
    %p210 = scmp.ne.s32.totalorder %s202, %s205
    %p211 = scmp.eq.s32.totalorder %s13, 0
    %p212 = por %p210, %p211
    %p213 = scmp.ne.s32.totalorder %s202, %s205
    %p214 = scmp.eq.s32.totalorder %s18, 7
    %p215 = por %p213, %p214
    %p216 = scmp.ne.s32.totalorder %s205, %s206
    %p217 = scmp.eq.s32.totalorder %s18, 0
    %p218 = por %p216, %p217
    %p219 = scmp.ne.s32.totalorder %s205, %s206
    %p220 = scmp.eq.s32.totalorder %s19, 7
    %p221 = por %p219, %p220
    %p223 = scmp.ne.s32.totalorder %s206, %s222
    %p224 = scmp.eq.s32.totalorder %s19, 0
    %p225 = por %p223, %p224
    %p226 = scmp.le.s32.totalorder 1, %s13
    %p227 = scmp.lt.s32.totalorder %s13, 9
    %p228 = pnand %p226, %p227
    %p229 = pneg %p228
    // Predicated region
    $region9: #{metric_block.2} parent=5 // pred_check
      _
    $region10: #{metric_block.2} parent=5 // pred_check_branch
      %231 = sbr.rel (%p228) target = $region12
    $region11: #{metric_block.2} parent=5 // pred_region
      %s232 = ssub.s32 %s13, 1
      // Predicated region
      $region13: #{metric_block.2} parent=11 // pred_check
        %p233 = pneg %p134
      $region14: #{metric_block.2} parent=11 // pred_check_branch
        %235 = sbr.rel (%p233) target = $region16
      $region15: #{metric_block.2} parent=11 // pred_region
        _
      $region16: #{metric_block.2} parent=11 // pred_fallthru
        _
    $region12: #{metric_block.2} parent=5 // pred_fallthru
      _
    %p236 = scmp.lt.s32.totalorder %s13, 8
    // Predicated region
    $region17: #{metric_block.2} parent=5 // pred_check
      %p237 = pneg %p236
    $region18: #{metric_block.2} parent=5 // pred_check_branch
      %239 = sbr.rel (%p237) target = $region20
    $region19: #{metric_block.2} parent=5 // pred_region
      // Predicated region
      $region21: #{metric_block.2} parent=19 // pred_check
        %p240 = pneg %p47
      $region22: #{metric_block.2} parent=19 // pred_check_branch
        %242 = sbr.rel (%p240) target = $region24
      $region23: #{metric_block.2} parent=19 // pred_region
        %p243 = scmp.lt.s32.totalorder %s20, 1
        %s244 = scalar_select %p243, %s20, 1
        %p245 = scmp.lt.s32.totalorder %s21, 5
        %s246 = scalar_select %p245, %s21, 5
        %s247 = smul.addr %s246, 20
        %s248 = smul.addr %s244, 120
        %s249 = sadd.s32 %s247, %s248
        %s250 = smul.addr %s249, 8
        %s251 = scalar_lea.vmem %s0, %s250
      $region24: #{metric_block.2} parent=19 // pred_fallthru
        _
      // Predicated region
      $region25: #{metric_block.2} parent=19 // pred_check
        %p252 = pneg %p77
      $region26: #{metric_block.2} parent=19 // pred_check_branch
        %254 = sbr.rel (%p252) target = $region28
      $region27: #{metric_block.2} parent=19 // pred_region
        %s255 = sadd.s32 %s21, 1
        %p256 = scmp.lt.s32.totalorder %s20, 1
        %s257 = scalar_select %p256, %s20, 1
        %p258 = scmp.lt.s32.totalorder %s255, 5
        %s259 = scalar_select %p258, %s255, 5
        %s260 = smul.addr %s259, 20
        %s261 = smul.addr %s257, 120
        %s262 = sadd.s32 %s260, %s261
        %s263 = smul.addr %s262, 8
        %s264 = scalar_lea.vmem %s1, %s263
        %s265 = sadd.s32 %s21, 1
      $region28: #{metric_block.2} parent=19 // pred_fallthru
        _
      // Predicated region
      $region29: #{metric_block.2} parent=19 // pred_check
        %p266 = pneg %p107
      $region30: #{metric_block.2} parent=19 // pred_check_branch
        %268 = sbr.rel (%p266) target = $region32
      $region31: #{metric_block.2} parent=19 // pred_region
        %s269 = sadd.s32 %s21, 2
        %p270 = scmp.lt.s32.totalorder %s20, 1
        %s271 = scalar_select %p270, %s20, 1
        %p272 = scmp.lt.s32.totalorder %s269, 5
        %s273 = scalar_select %p272, %s269, 5
        %s274 = smul.addr %s273, 20
        %s275 = smul.addr %s271, 120
        %s276 = sadd.s32 %s274, %s275
        %s277 = smul.addr %s276, 8
        %s278 = scalar_lea.vmem %s2, %s277
        %s279 = sadd.s32 %s21, 2
      $region32: #{metric_block.2} parent=19 // pred_fallthru
        _
    $region20: #{metric_block.2} parent=5 // pred_fallthru
      _
    %p280 = scmp.le.s32.totalorder 1, %s13
    %p281 = scmp.lt.s32.totalorder %s13, 9
    %p282 = pnand %p280, %p281
    %p283 = pneg %p282
    // Predicated region
    $region33: #{metric_block.2} parent=5 // pred_check
      _
    $region34: #{metric_block.2} parent=5 // pred_check_branch
      %285 = sbr.rel (%p282) target = $region36
    $region35: #{metric_block.2} parent=5 // pred_region
      %s286 = ssub.s32 %s13, 1
      %p287 = scmp.lt.s32.totalorder %s22, 1
      %s288 = scalar_select %p287, %s22, 1
      %p289 = scmp.lt.s32.totalorder %s23, 5
      %s290 = scalar_select %p289, %s23, 5
      %s291 = smul.addr %s290, 20
      %s292 = smul.addr %s288, 120
      %s293 = sadd.s32 %s291, %s292
      %s294 = smul.addr %s293, 8
      %s295 = scalar_lea.vmem %s0, %s294
      %p296 = pneg %p53
      %p297 = pneg %p50
      %s298 = sadd.s32 %s23, 1
      %p299 = scmp.lt.s32.totalorder %s22, 1
      %s300 = scalar_select %p299, %s22, 1
      %p301 = scmp.lt.s32.totalorder %s298, 5
      %s302 = scalar_select %p301, %s298, 5
      %s303 = smul.addr %s302, 20
      %s304 = smul.addr %s300, 120
      %s305 = sadd.s32 %s303, %s304
      %s306 = smul.addr %s305, 8
      %s307 = scalar_lea.vmem %s1, %s306
      %p308 = pneg %p83
      %p309 = pneg %p80
      %s310 = sadd.s32 %s23, 2
      %p311 = scmp.lt.s32.totalorder %s22, 1
      %s312 = scalar_select %p311, %s22, 1
      %p313 = scmp.lt.s32.totalorder %s310, 5
      %s314 = scalar_select %p313, %s310, 5
      %s315 = smul.addr %s314, 20
      %s316 = smul.addr %s312, 120
      %s317 = sadd.s32 %s315, %s316
      %s318 = smul.addr %s317, 8
      %s319 = scalar_lea.vmem %s2, %s318
      %p320 = pneg %p113
      %p321 = pneg %p110
      %p322 = pneg %p134
      %p323 = pneg %p131
      %p324 = pneg %p162
      %p325 = pneg %p159
      %p326 = scmp.lt.s32.totalorder %s22, 1
      %s327 = scalar_select %p326, %s22, 1
      %p328 = scmp.lt.s32.totalorder %s23, 3
      %s329 = scalar_select %p328, %s23, 3
      %s330 = smul.addr %s329, 8
      %s331 = smul.addr %s327, 32
      %s332 = sadd.s32 %s330, %s331
      %s333 = smul.addr %s332, 8
      %s334 = scalar_lea.vmem %s4, %s333
      %p335 = pneg %p190
      %p336 = pneg %p187
      %p337 = scmp.lt.s32.totalorder %s22, 1
      %s338 = scalar_select %p337, %s22, 1
      %p339 = scmp.lt.s32.totalorder %s23, 3
      %s340 = scalar_select %p339, %s23, 3
      %s341 = smul.addr %s338, 4
      %s342 = sadd.s32 %s340, %s341
      %s343 = scalar_lea.vmem %s5, %s342
      %p344 = pneg %p218
      %p345 = pneg %p215
      %p346 = scmp.lt.s32.totalorder %s22, 1
      %s347 = scalar_select %p346, %s22, 1
      %p348 = scmp.lt.s32.totalorder %s23, 3
      %s349 = scalar_select %p348, %s23, 3
      %s350 = smul.addr %s347, 4
      %s351 = sadd.s32 %s349, %s350
      %s352 = scalar_lea.vmem %s6, %s351
      %p353 = scmp.lt.s32.totalorder %s22, 1
      %s354 = scalar_select %p353, %s22, 1
      %p355 = scmp.lt.s32.totalorder %s23, 5
      %s356 = scalar_select %p355, %s23, 5
      %s357 = smul.addr %s356, 20
      %s358 = smul.addr %s354, 120
      %s359 = sadd.s32 %s357, %s358
      %s360 = smul.addr %s359, 8
      %s361 = scalar_lea.vmem %s0, %s360
      %s362 = sadd.s32 %s23, 1
      %p363 = scmp.lt.s32.totalorder %s22, 1
      %s364 = scalar_select %p363, %s22, 1
      %p365 = scmp.lt.s32.totalorder %s362, 5
      %s366 = scalar_select %p365, %s362, 5
      %s367 = smul.addr %s366, 20
      %s368 = smul.addr %s364, 120
      %s369 = sadd.s32 %s367, %s368
      %s370 = smul.addr %s369, 8
      %s371 = scalar_lea.vmem %s1, %s370
      %s372 = sadd.s32 %s23, 1
      %s373 = sadd.s32 %s23, 2
      %p374 = scmp.lt.s32.totalorder %s22, 1
      %s375 = scalar_select %p374, %s22, 1
      %p376 = scmp.lt.s32.totalorder %s373, 5
      %s377 = scalar_select %p376, %s373, 5
      %s378 = smul.addr %s377, 20
      %s379 = smul.addr %s375, 120
      %s380 = sadd.s32 %s378, %s379
      %s381 = smul.addr %s380, 8
      %s382 = scalar_lea.vmem %s2, %s381
      %s383 = sadd.s32 %s23, 2
      %p384 = scmp.lt.s32.totalorder %s22, 1
      %s385 = scalar_select %p384, %s22, 1
      %p386 = scmp.lt.s32.totalorder %s23, 3
      %s387 = scalar_select %p386, %s23, 3
      %s388 = smul.addr %s387, 8
      %s389 = smul.addr %s385, 32
      %s390 = sadd.s32 %s388, %s389
      %s391 = smul.addr %s390, 8
      %s392 = scalar_lea.vmem %s4, %s391
      %p393 = scmp.lt.s32.totalorder %s22, 1
      %s394 = scalar_select %p393, %s22, 1
      %p395 = scmp.lt.s32.totalorder %s23, 3
      %s396 = scalar_select %p395, %s23, 3
      %s397 = smul.addr %s394, 4
      %s398 = sadd.s32 %s396, %s397
      %s399 = scalar_lea.vmem %s5, %s398
      %p400 = scmp.lt.s32.totalorder %s22, 1
      %s401 = scalar_select %p400, %s22, 1
      %p402 = scmp.lt.s32.totalorder %s23, 3
      %s403 = scalar_select %p402, %s23, 3
      %s404 = smul.addr %s401, 4
      %s405 = sadd.s32 %s403, %s404
      %s406 = scalar_lea.vmem %s6, %s405
      %v407 = vld [vmem:[%s361] sm:$0xff]
      %v408 = vld [vmem:[%s361 + $0x8] sm:$0x3]
      %v409 = vld [vmem:[%s361 + $0x10] sm:$0xff]
      %v410 = vld [vmem:[%s361 + $0x18] sm:$0x3]
      %v411 = vld [vmem:[%s361 + $0x20] sm:$0xff]
      %v412 = vld [vmem:[%s361 + $0x28] sm:$0x3]
      %v413 = vld [vmem:[%s361 + $0x30] sm:$0xff]
      %v414 = vld [vmem:[%s361 + $0x38] sm:$0x3]
      %v415 = vld [vmem:[%s361 + $0x40] sm:$0xff]
      %v416 = vld [vmem:[%s361 + $0x48] sm:$0x3]
      %v417 = vld [vmem:[%s361 + $0x50] sm:$0xff]
      %v418 = vld [vmem:[%s361 + $0x58] sm:$0x3]
      %v419 = vld [vmem:[%s361 + $0x60] sm:$0xff]
      %v420 = vld [vmem:[%s361 + $0x68] sm:$0x3]
      %v421 = vld [vmem:[%s361 + $0x70] sm:$0xff]
      %v422 = vld [vmem:[%s361 + $0x78] sm:$0x3]
      %v423 = vld [vmem:[%s361 + $0x80] sm:$0xff]
      %v424 = vld [vmem:[%s361 + $0x88] sm:$0x3]
      %v425 = vld [vmem:[%s361 + $0x90] sm:$0xff]
      %v426 = vld [vmem:[%s361 + $0x98] sm:$0x3]
      %v427 = vld [vmem:[%s371] sm:$0xff]
      %v428 = vld [vmem:[%s371 + $0x8] sm:$0x3]
      %v429 = vld [vmem:[%s371 + $0x10] sm:$0xff]
      %v430 = vld [vmem:[%s371 + $0x18] sm:$0x3]
      %v431 = vld [vmem:[%s371 + $0x20] sm:$0xff]
      %v432 = vld [vmem:[%s371 + $0x28] sm:$0x3]
      %v433 = vld [vmem:[%s371 + $0x30] sm:$0xff]
      %v434 = vld [vmem:[%s371 + $0x38] sm:$0x3]
      %v435 = vld [vmem:[%s371 + $0x40] sm:$0xff]
      %v436 = vld [vmem:[%s371 + $0x48] sm:$0x3]
      %v437 = vld [vmem:[%s371 + $0x50] sm:$0xff]
      %v438 = vld [vmem:[%s371 + $0x58] sm:$0x3]
      %v439 = vld [vmem:[%s371 + $0x60] sm:$0xff]
      %v440 = vld [vmem:[%s371 + $0x68] sm:$0x3]
      %v441 = vld [vmem:[%s371 + $0x70] sm:$0xff]
      %v442 = vld [vmem:[%s371 + $0x78] sm:$0x3]
      %v443 = vld [vmem:[%s371 + $0x80] sm:$0xff]
      %v444 = vld [vmem:[%s371 + $0x88] sm:$0x3]
      %v445 = vld [vmem:[%s371 + $0x90] sm:$0xff]
      %v446 = vld [vmem:[%s371 + $0x98] sm:$0x3]
      %v447 = vld [vmem:[%s382] sm:$0xff]
      %v448 = vld [vmem:[%s382 + $0x8] sm:$0x3]
      %v449 = vld [vmem:[%s382 + $0x10] sm:$0xff]
      %v450 = vld [vmem:[%s382 + $0x18] sm:$0x3]
      %v451 = vld [vmem:[%s382 + $0x20] sm:$0xff]
      %v452 = vld [vmem:[%s382 + $0x28] sm:$0x3]
      %v453 = vld [vmem:[%s382 + $0x30] sm:$0xff]
      %v454 = vld [vmem:[%s382 + $0x38] sm:$0x3]
      %v455 = vld [vmem:[%s382 + $0x40] sm:$0xff]
      %v456 = vld [vmem:[%s382 + $0x48] sm:$0x3]
      %v457 = vld [vmem:[%s382 + $0x50] sm:$0xff]
      %v458 = vld [vmem:[%s382 + $0x58] sm:$0x3]
      %v459 = vld [vmem:[%s382 + $0x60] sm:$0xff]
      %v460 = vld [vmem:[%s382 + $0x68] sm:$0x3]
      %v461 = vld [vmem:[%s382 + $0x70] sm:$0xff]
      %v462 = vld [vmem:[%s382 + $0x78] sm:$0x3]
      %v463 = vld [vmem:[%s382 + $0x80] sm:$0xff]
      %v464 = vld [vmem:[%s382 + $0x88] sm:$0x3]
      %v465 = vld [vmem:[%s382 + $0x90] sm:$0xff]
      %v466 = vld [vmem:[%s382 + $0x98] sm:$0x3]
      %vm483 = vcmask 1046528
      %v484 = vrot.slane %v407, 1
      %v485 = vrot.slane %v408, 1
      %v486 = vsel %vm483, %v484, %v485
      %v487 = vrot.slane %v409, 1
      %v488 = vrot.slane %v410, 1
      %v489 = vsel %vm483, %v487, %v488
      %v490 = vrot.slane %v411, 1
      %v491 = vrot.slane %v412, 1
      %v492 = vsel %vm483, %v490, %v491
      %v493 = vrot.slane %v413, 1
      %v494 = vrot.slane %v414, 1
      %v495 = vsel %vm483, %v493, %v494
      %v496 = vrot.slane %v415, 1
      %v497 = vrot.slane %v416, 1
      %v498 = vsel %vm483, %v496, %v497
      %v499 = vrot.slane %v417, 1
      %v500 = vrot.slane %v418, 1
      %v501 = vsel %vm483, %v499, %v500
      %v502 = vrot.slane %v419, 1
      %v503 = vrot.slane %v420, 1
      %v504 = vsel %vm483, %v502, %v503
      %v505 = vrot.slane %v421, 1
      %v506 = vrot.slane %v422, 1
      %v507 = vsel %vm483, %v505, %v506
      %508 = vrot.lane.b32.xlu0 %v486, 4
      %v509 = vpop.permute.xlu0 %508
      %510 = vrot.lane.b32.xlu0 %v489, 4
      %v511 = vpop.permute.xlu0 %510
      %512 = vrot.lane.b32.xlu0 %v492, 4
      %v513 = vpop.permute.xlu0 %512
      %514 = vrot.lane.b32.xlu0 %v495, 4
      %v515 = vpop.permute.xlu0 %514
      %516 = vrot.lane.b32.xlu0 %v498, 4
      %v517 = vpop.permute.xlu0 %516
      %518 = vrot.lane.b32.xlu0 %v501, 4
      %v519 = vpop.permute.xlu0 %518
      %520 = vrot.lane.b32.xlu0 %v504, 4
      %v521 = vpop.permute.xlu0 %520
      %522 = vrot.lane.b32.xlu0 %v507, 4
      %v523 = vpop.permute.xlu0 %522
      %vm532 = vcmask 1045504
      %v533 = vrot.slane %v407, 2
      %v534 = vrot.slane %v408, 2
      %v535 = vsel %vm532, %v533, %v534
      %v536 = vrot.slane %v409, 2
      %v537 = vrot.slane %v410, 2
      %v538 = vsel %vm532, %v536, %v537
      %v539 = vrot.slane %v411, 2
      %v540 = vrot.slane %v412, 2
      %v541 = vsel %vm532, %v539, %v540
      %v542 = vrot.slane %v413, 2
      %v543 = vrot.slane %v414, 2
      %v544 = vsel %vm532, %v542, %v543
      %v545 = vrot.slane %v415, 2
      %v546 = vrot.slane %v416, 2
      %v547 = vsel %vm532, %v545, %v546
      %v548 = vrot.slane %v417, 2
      %v549 = vrot.slane %v418, 2
      %v550 = vsel %vm532, %v548, %v549
      %v551 = vrot.slane %v419, 2
      %v552 = vrot.slane %v420, 2
      %v553 = vsel %vm532, %v551, %v552
      %v554 = vrot.slane %v421, 2
      %v555 = vrot.slane %v422, 2
      %v556 = vsel %vm532, %v554, %v555
      %557 = vrot.lane.b32.xlu0 %v535, 8
      %v558 = vpop.permute.xlu0 %557
      %559 = vrot.lane.b32.xlu0 %v538, 8
      %v560 = vpop.permute.xlu0 %559
      %561 = vrot.lane.b32.xlu0 %v541, 8
      %v562 = vpop.permute.xlu0 %561
      %563 = vrot.lane.b32.xlu0 %v544, 8
      %v564 = vpop.permute.xlu0 %563
      %565 = vrot.lane.b32.xlu0 %v547, 8
      %v566 = vpop.permute.xlu0 %565
      %567 = vrot.lane.b32.xlu0 %v550, 8
      %v568 = vpop.permute.xlu0 %567
      %569 = vrot.lane.b32.xlu0 %v553, 8
      %v570 = vpop.permute.xlu0 %569
      %571 = vrot.lane.b32.xlu0 %v556, 8
      %v572 = vpop.permute.xlu0 %571
      %582 = vrot.lane.b32.xlu0 %v409, 12
      %v583 = vpop.permute.xlu0 %582
      %584 = vrot.lane.b32.xlu0 %v411, 12
      %v585 = vpop.permute.xlu0 %584
      %586 = vrot.lane.b32.xlu0 %v413, 12
      %v587 = vpop.permute.xlu0 %586
      %588 = vrot.lane.b32.xlu0 %v415, 12
      %v589 = vpop.permute.xlu0 %588
      %590 = vrot.lane.b32.xlu0 %v417, 12
      %v591 = vpop.permute.xlu0 %590
      %592 = vrot.lane.b32.xlu0 %v419, 12
      %v593 = vpop.permute.xlu0 %592
      %594 = vrot.lane.b32.xlu0 %v421, 12
      %v595 = vpop.permute.xlu0 %594
      %596 = vrot.lane.b32.xlu0 %v423, 12
      %v597 = vpop.permute.xlu0 %596
      %v607 = vrot.slane %v423, 1
      %v608 = vrot.slane %v424, 1
      %v609 = vsel %vm483, %v607, %v608
      %610 = vrot.lane.b32.xlu0 %v489, 16
      %v611 = vpop.permute.xlu0 %610
      %612 = vrot.lane.b32.xlu0 %v492, 16
      %v613 = vpop.permute.xlu0 %612
      %614 = vrot.lane.b32.xlu0 %v495, 16
      %v615 = vpop.permute.xlu0 %614
      %616 = vrot.lane.b32.xlu0 %v498, 16
      %v617 = vpop.permute.xlu0 %616
      %618 = vrot.lane.b32.xlu0 %v501, 16
      %v619 = vpop.permute.xlu0 %618
      %620 = vrot.lane.b32.xlu0 %v504, 16
      %v621 = vpop.permute.xlu0 %620
      %622 = vrot.lane.b32.xlu0 %v507, 16
      %v623 = vpop.permute.xlu0 %622
      %624 = vrot.lane.b32.xlu0 %v609, 16
      %v625 = vpop.permute.xlu0 %624
      %v634 = vrot.slane %v423, 2
      %v635 = vrot.slane %v424, 2
      %v636 = vsel %vm532, %v634, %v635
      %637 = vrot.lane.b32.xlu0 %v538, 20
      %v638 = vpop.permute.xlu0 %637
      %639 = vrot.lane.b32.xlu0 %v541, 20
      %v640 = vpop.permute.xlu0 %639
      %641 = vrot.lane.b32.xlu0 %v544, 20
      %v642 = vpop.permute.xlu0 %641
      %643 = vrot.lane.b32.xlu0 %v547, 20
      %v644 = vpop.permute.xlu0 %643
      %645 = vrot.lane.b32.xlu0 %v550, 20
      %v646 = vpop.permute.xlu0 %645
      %647 = vrot.lane.b32.xlu0 %v553, 20
      %v648 = vpop.permute.xlu0 %647
      %649 = vrot.lane.b32.xlu0 %v556, 20
      %v650 = vpop.permute.xlu0 %649
      %651 = vrot.lane.b32.xlu0 %v636, 20
      %v652 = vpop.permute.xlu0 %651
      %662 = vrot.lane.b32.xlu0 %v411, 24
      %v663 = vpop.permute.xlu0 %662
      %664 = vrot.lane.b32.xlu0 %v413, 24
      %v665 = vpop.permute.xlu0 %664
      %666 = vrot.lane.b32.xlu0 %v415, 24
      %v667 = vpop.permute.xlu0 %666
      %668 = vrot.lane.b32.xlu0 %v417, 24
      %v669 = vpop.permute.xlu0 %668
      %670 = vrot.lane.b32.xlu0 %v419, 24
      %v671 = vpop.permute.xlu0 %670
      %672 = vrot.lane.b32.xlu0 %v421, 24
      %v673 = vpop.permute.xlu0 %672
      %674 = vrot.lane.b32.xlu0 %v423, 24
      %v675 = vpop.permute.xlu0 %674
      %676 = vrot.lane.b32.xlu0 %v425, 24
      %v677 = vpop.permute.xlu0 %676
      %v687 = vrot.slane %v425, 1
      %v688 = vrot.slane %v426, 1
      %v689 = vsel %vm483, %v687, %v688
      %690 = vrot.lane.b32.xlu0 %v492, 28
      %v691 = vpop.permute.xlu0 %690
      %692 = vrot.lane.b32.xlu0 %v495, 28
      %v693 = vpop.permute.xlu0 %692
      %694 = vrot.lane.b32.xlu0 %v498, 28
      %v695 = vpop.permute.xlu0 %694
      %696 = vrot.lane.b32.xlu0 %v501, 28
      %v697 = vpop.permute.xlu0 %696
      %698 = vrot.lane.b32.xlu0 %v504, 28
      %v699 = vpop.permute.xlu0 %698
      %700 = vrot.lane.b32.xlu0 %v507, 28
      %v701 = vpop.permute.xlu0 %700
      %702 = vrot.lane.b32.xlu0 %v609, 28
      %v703 = vpop.permute.xlu0 %702
      %704 = vrot.lane.b32.xlu0 %v689, 28
      %v705 = vpop.permute.xlu0 %704
      %v714 = vrot.slane %v425, 2
      %v715 = vrot.slane %v426, 2
      %v716 = vsel %vm532, %v714, %v715
      %717 = vrot.lane.b32.xlu0 %v541, 32
      %v718 = vpop.permute.xlu0 %717
      %719 = vrot.lane.b32.xlu0 %v544, 32
      %v720 = vpop.permute.xlu0 %719
      %721 = vrot.lane.b32.xlu0 %v547, 32
      %v722 = vpop.permute.xlu0 %721
      %723 = vrot.lane.b32.xlu0 %v550, 32
      %v724 = vpop.permute.xlu0 %723
      %725 = vrot.lane.b32.xlu0 %v553, 32
      %v726 = vpop.permute.xlu0 %725
      %727 = vrot.lane.b32.xlu0 %v556, 32
      %v728 = vpop.permute.xlu0 %727
      %729 = vrot.lane.b32.xlu0 %v636, 32
      %v730 = vpop.permute.xlu0 %729
      %731 = vrot.lane.b32.xlu0 %v716, 32
      %v732 = vpop.permute.xlu0 %731
      %749 = vrot.lane.b32.xlu0 %v427, 36
      %v750 = vpop.permute.xlu0 %749
      %751 = vrot.lane.b32.xlu0 %v429, 36
      %v752 = vpop.permute.xlu0 %751
      %753 = vrot.lane.b32.xlu0 %v431, 36
      %v754 = vpop.permute.xlu0 %753
      %755 = vrot.lane.b32.xlu0 %v433, 36
      %v756 = vpop.permute.xlu0 %755
      %757 = vrot.lane.b32.xlu0 %v435, 36
      %v758 = vpop.permute.xlu0 %757
      %759 = vrot.lane.b32.xlu0 %v437, 36
      %v760 = vpop.permute.xlu0 %759
      %761 = vrot.lane.b32.xlu0 %v439, 36
      %v762 = vpop.permute.xlu0 %761
      %763 = vrot.lane.b32.xlu0 %v441, 36
      %v764 = vpop.permute.xlu0 %763
      %v781 = vrot.slane %v427, 1
      %v782 = vrot.slane %v428, 1
      %v783 = vsel %vm483, %v781, %v782
      %v784 = vrot.slane %v429, 1
      %v785 = vrot.slane %v430, 1
      %v786 = vsel %vm483, %v784, %v785
      %v787 = vrot.slane %v431, 1
      %v788 = vrot.slane %v432, 1
      %v789 = vsel %vm483, %v787, %v788
      %v790 = vrot.slane %v433, 1
      %v791 = vrot.slane %v434, 1
      %v792 = vsel %vm483, %v790, %v791
      %v793 = vrot.slane %v435, 1
      %v794 = vrot.slane %v436, 1
      %v795 = vsel %vm483, %v793, %v794
      %v796 = vrot.slane %v437, 1
      %v797 = vrot.slane %v438, 1
      %v798 = vsel %vm483, %v796, %v797
      %v799 = vrot.slane %v439, 1
      %v800 = vrot.slane %v440, 1
      %v801 = vsel %vm483, %v799, %v800
      %v802 = vrot.slane %v441, 1
      %v803 = vrot.slane %v442, 1
      %v804 = vsel %vm483, %v802, %v803
      %805 = vrot.lane.b32.xlu0 %v783, 40
      %v806 = vpop.permute.xlu0 %805
      %807 = vrot.lane.b32.xlu0 %v786, 40
      %v808 = vpop.permute.xlu0 %807
      %809 = vrot.lane.b32.xlu0 %v789, 40
      %v810 = vpop.permute.xlu0 %809
      %811 = vrot.lane.b32.xlu0 %v792, 40
      %v812 = vpop.permute.xlu0 %811
      %813 = vrot.lane.b32.xlu0 %v795, 40
      %v814 = vpop.permute.xlu0 %813
      %815 = vrot.lane.b32.xlu0 %v798, 40
      %v816 = vpop.permute.xlu0 %815
      %817 = vrot.lane.b32.xlu0 %v801, 40
      %v818 = vpop.permute.xlu0 %817
      %819 = vrot.lane.b32.xlu0 %v804, 40
      %v820 = vpop.permute.xlu0 %819
      %v829 = vrot.slane %v427, 2
      %v830 = vrot.slane %v428, 2
      %v831 = vsel %vm532, %v829, %v830
      %v832 = vrot.slane %v429, 2
      %v833 = vrot.slane %v430, 2
      %v834 = vsel %vm532, %v832, %v833
      %v835 = vrot.slane %v431, 2
      %v836 = vrot.slane %v432, 2
      %v837 = vsel %vm532, %v835, %v836
      %v838 = vrot.slane %v433, 2
      %v839 = vrot.slane %v434, 2
      %v840 = vsel %vm532, %v838, %v839
      %v841 = vrot.slane %v435, 2
      %v842 = vrot.slane %v436, 2
      %v843 = vsel %vm532, %v841, %v842
      %v844 = vrot.slane %v437, 2
      %v845 = vrot.slane %v438, 2
      %v846 = vsel %vm532, %v844, %v845
      %v847 = vrot.slane %v439, 2
      %v848 = vrot.slane %v440, 2
      %v849 = vsel %vm532, %v847, %v848
      %v850 = vrot.slane %v441, 2
      %v851 = vrot.slane %v442, 2
      %v852 = vsel %vm532, %v850, %v851
      %853 = vrot.lane.b32.xlu0 %v831, 44
      %v854 = vpop.permute.xlu0 %853
      %855 = vrot.lane.b32.xlu0 %v834, 44
      %v856 = vpop.permute.xlu0 %855
      %857 = vrot.lane.b32.xlu0 %v837, 44
      %v858 = vpop.permute.xlu0 %857
      %859 = vrot.lane.b32.xlu0 %v840, 44
      %v860 = vpop.permute.xlu0 %859
      %861 = vrot.lane.b32.xlu0 %v843, 44
      %v862 = vpop.permute.xlu0 %861
      %863 = vrot.lane.b32.xlu0 %v846, 44
      %v864 = vpop.permute.xlu0 %863
      %865 = vrot.lane.b32.xlu0 %v849, 44
      %v866 = vpop.permute.xlu0 %865
      %867 = vrot.lane.b32.xlu0 %v852, 44
      %v868 = vpop.permute.xlu0 %867
      %878 = vrot.lane.b32.xlu0 %v429, 48
      %v879 = vpop.permute.xlu0 %878
      %880 = vrot.lane.b32.xlu0 %v431, 48
      %v881 = vpop.permute.xlu0 %880
      %882 = vrot.lane.b32.xlu0 %v433, 48
      %v883 = vpop.permute.xlu0 %882
      %884 = vrot.lane.b32.xlu0 %v435, 48
      %v885 = vpop.permute.xlu0 %884
      %886 = vrot.lane.b32.xlu0 %v437, 48
      %v887 = vpop.permute.xlu0 %886
      %888 = vrot.lane.b32.xlu0 %v439, 48
      %v889 = vpop.permute.xlu0 %888
      %890 = vrot.lane.b32.xlu0 %v441, 48
      %v891 = vpop.permute.xlu0 %890
      %892 = vrot.lane.b32.xlu0 %v443, 48
      %v893 = vpop.permute.xlu0 %892
      %v903 = vrot.slane %v443, 1
      %v904 = vrot.slane %v444, 1
      %v905 = vsel %vm483, %v903, %v904
      %906 = vrot.lane.b32.xlu0 %v786, 52
      %v907 = vpop.permute.xlu0 %906
      %908 = vrot.lane.b32.xlu0 %v789, 52
      %v909 = vpop.permute.xlu0 %908
      %910 = vrot.lane.b32.xlu0 %v792, 52
      %v911 = vpop.permute.xlu0 %910
      %912 = vrot.lane.b32.xlu0 %v795, 52
      %v913 = vpop.permute.xlu0 %912
      %914 = vrot.lane.b32.xlu0 %v798, 52
      %v915 = vpop.permute.xlu0 %914
      %916 = vrot.lane.b32.xlu0 %v801, 52
      %v917 = vpop.permute.xlu0 %916
      %918 = vrot.lane.b32.xlu0 %v804, 52
      %v919 = vpop.permute.xlu0 %918
      %920 = vrot.lane.b32.xlu0 %v905, 52
      %v921 = vpop.permute.xlu0 %920
      %v930 = vrot.slane %v443, 2
      %v931 = vrot.slane %v444, 2
      %v932 = vsel %vm532, %v930, %v931
      %933 = vrot.lane.b32.xlu0 %v834, 56
      %v934 = vpop.permute.xlu0 %933
      %935 = vrot.lane.b32.xlu0 %v837, 56
      %v936 = vpop.permute.xlu0 %935
      %937 = vrot.lane.b32.xlu0 %v840, 56
      %v938 = vpop.permute.xlu0 %937
      %939 = vrot.lane.b32.xlu0 %v843, 56
      %v940 = vpop.permute.xlu0 %939
      %941 = vrot.lane.b32.xlu0 %v846, 56
      %v942 = vpop.permute.xlu0 %941
      %943 = vrot.lane.b32.xlu0 %v849, 56
      %v944 = vpop.permute.xlu0 %943
      %945 = vrot.lane.b32.xlu0 %v852, 56
      %v946 = vpop.permute.xlu0 %945
      %947 = vrot.lane.b32.xlu0 %v932, 56
      %v948 = vpop.permute.xlu0 %947
      %958 = vrot.lane.b32.xlu0 %v431, 60
      %v959 = vpop.permute.xlu0 %958
      %960 = vrot.lane.b32.xlu0 %v433, 60
      %v961 = vpop.permute.xlu0 %960
      %962 = vrot.lane.b32.xlu0 %v435, 60
      %v963 = vpop.permute.xlu0 %962
      %964 = vrot.lane.b32.xlu0 %v437, 60
      %v965 = vpop.permute.xlu0 %964
      %966 = vrot.lane.b32.xlu0 %v439, 60
      %v967 = vpop.permute.xlu0 %966
      %968 = vrot.lane.b32.xlu0 %v441, 60
      %v969 = vpop.permute.xlu0 %968
      %970 = vrot.lane.b32.xlu0 %v443, 60
      %v971 = vpop.permute.xlu0 %970
      %972 = vrot.lane.b32.xlu0 %v445, 60
      %v973 = vpop.permute.xlu0 %972
      %vm982 = vcmask 31744
      %v983 = vsel %vm982, %v407, %v509
      %v984 = vsel %vm982, %v409, %v511
      %v985 = vsel %vm982, %v411, %v513
      %v986 = vsel %vm982, %v413, %v515
      %v987 = vsel %vm982, %v415, %v517
      %v988 = vsel %vm982, %v417, %v519
      %v989 = vsel %vm982, %v419, %v521
      %v990 = vsel %vm982, %v421, %v523
      %vm991 = vcmask 64512
      %v992 = vsel %vm991, %v983, %v558
      %v993 = vsel %vm991, %v984, %v560
      %v994 = vsel %vm991, %v985, %v562
      %v995 = vsel %vm991, %v986, %v564
      %v996 = vsel %vm991, %v987, %v566
      %v997 = vsel %vm991, %v988, %v568
      %v998 = vsel %vm991, %v989, %v570
      %v999 = vsel %vm991, %v990, %v572
      %vm1000 = vcmask 97280
      %v1001 = vsel %vm1000, %v992, %v583
      %v1002 = vsel %vm1000, %v993, %v585
      %v1003 = vsel %vm1000, %v994, %v587
      %v1004 = vsel %vm1000, %v995, %v589
      %v1005 = vsel %vm1000, %v996, %v591
      %v1006 = vsel %vm1000, %v997, %v593
      %v1007 = vsel %vm1000, %v998, %v595
      %v1008 = vsel %vm1000, %v999, %v597
      %vm1009 = vcmask 130048
      %v1010 = vsel %vm1009, %v1001, %v611
      %v1011 = vsel %vm1009, %v1002, %v613
      %v1012 = vsel %vm1009, %v1003, %v615
      %v1013 = vsel %vm1009, %v1004, %v617
      %v1014 = vsel %vm1009, %v1005, %v619
      %v1015 = vsel %vm1009, %v1006, %v621
      %v1016 = vsel %vm1009, %v1007, %v623
      %v1017 = vsel %vm1009, %v1008, %v625
      %vm1018 = vcmask 162816
      %v1019 = vsel %vm1018, %v1010, %v638
      %v1020 = vsel %vm1018, %v1011, %v640
      %v1021 = vsel %vm1018, %v1012, %v642
      %v1022 = vsel %vm1018, %v1013, %v644
      %v1023 = vsel %vm1018, %v1014, %v646
      %v1024 = vsel %vm1018, %v1015, %v648
      %v1025 = vsel %vm1018, %v1016, %v650
      %v1026 = vsel %vm1018, %v1017, %v652
      %vm1027 = vcmask 195584
      %v1028 = vsel %vm1027, %v1019, %v663
      %v1029 = vsel %vm1027, %v1020, %v665
      %v1030 = vsel %vm1027, %v1021, %v667
      %v1031 = vsel %vm1027, %v1022, %v669
      %v1032 = vsel %vm1027, %v1023, %v671
      %v1033 = vsel %vm1027, %v1024, %v673
      %v1034 = vsel %vm1027, %v1025, %v675
      %v1035 = vsel %vm1027, %v1026, %v677
      %vm1036 = vcmask 228352
      %v1037 = vsel %vm1036, %v1028, %v691
      %v1038 = vsel %vm1036, %v1029, %v693
      %v1039 = vsel %vm1036, %v1030, %v695
      %v1040 = vsel %vm1036, %v1031, %v697
      %v1041 = vsel %vm1036, %v1032, %v699
      %v1042 = vsel %vm1036, %v1033, %v701
      %v1043 = vsel %vm1036, %v1034, %v703
      %v1044 = vsel %vm1036, %v1035, %v705
      %vm1045 = vcmask 261120
      %v1046 = vsel %vm1045, %v1037, %v718
      %v1047 = vsel %vm1045, %v1038, %v720
      %v1048 = vsel %vm1045, %v1039, %v722
      %v1049 = vsel %vm1045, %v1040, %v724
      %v1050 = vsel %vm1045, %v1041, %v726
      %v1051 = vsel %vm1045, %v1042, %v728
      %v1052 = vsel %vm1045, %v1043, %v730
      %v1053 = vsel %vm1045, %v1044, %v732
      %vm1054 = vcmask 293888
      %v1055 = vsel %vm1054, %v1046, %v750
      %v1056 = vsel %vm1054, %v1047, %v752
      %v1057 = vsel %vm1054, %v1048, %v754
      %v1058 = vsel %vm1054, %v1049, %v756
      %v1059 = vsel %vm1054, %v1050, %v758
      %v1060 = vsel %vm1054, %v1051, %v760
      %v1061 = vsel %vm1054, %v1052, %v762
      %v1062 = vsel %vm1054, %v1053, %v764
      %vm1063 = vcmask 326656
      %v1064 = vsel %vm1063, %v1055, %v806
      %v1065 = vsel %vm1063, %v1056, %v808
      %v1066 = vsel %vm1063, %v1057, %v810
      %v1067 = vsel %vm1063, %v1058, %v812
      %v1068 = vsel %vm1063, %v1059, %v814
      %v1069 = vsel %vm1063, %v1060, %v816
      %v1070 = vsel %vm1063, %v1061, %v818
      %v1071 = vsel %vm1063, %v1062, %v820
      %vm1072 = vcmask 359424
      %v1073 = vsel %vm1072, %v1064, %v854
      %v1074 = vsel %vm1072, %v1065, %v856
      %v1075 = vsel %vm1072, %v1066, %v858
      %v1076 = vsel %vm1072, %v1067, %v860
      %v1077 = vsel %vm1072, %v1068, %v862
      %v1078 = vsel %vm1072, %v1069, %v864
      %v1079 = vsel %vm1072, %v1070, %v866
      %v1080 = vsel %vm1072, %v1071, %v868
      %vm1081 = vcmask 392192
      %v1082 = vsel %vm1081, %v1073, %v879
      %v1083 = vsel %vm1081, %v1074, %v881
      %v1084 = vsel %vm1081, %v1075, %v883
      %v1085 = vsel %vm1081, %v1076, %v885
      %v1086 = vsel %vm1081, %v1077, %v887
      %v1087 = vsel %vm1081, %v1078, %v889
      %v1088 = vsel %vm1081, %v1079, %v891
      %v1089 = vsel %vm1081, %v1080, %v893
      %vm1090 = vcmask 424960
      %v1091 = vsel %vm1090, %v1082, %v907
      %v1092 = vsel %vm1090, %v1083, %v909
      %v1093 = vsel %vm1090, %v1084, %v911
      %v1094 = vsel %vm1090, %v1085, %v913
      %v1095 = vsel %vm1090, %v1086, %v915
      %v1096 = vsel %vm1090, %v1087, %v917
      %v1097 = vsel %vm1090, %v1088, %v919
      %v1098 = vsel %vm1090, %v1089, %v921
      %vm1099 = vcmask 457728
      %v1100 = vsel %vm1099, %v1091, %v934
      %v1101 = vsel %vm1099, %v1092, %v936
      %v1102 = vsel %vm1099, %v1093, %v938
      %v1103 = vsel %vm1099, %v1094, %v940
      %v1104 = vsel %vm1099, %v1095, %v942
      %v1105 = vsel %vm1099, %v1096, %v944
      %v1106 = vsel %vm1099, %v1097, %v946
      %v1107 = vsel %vm1099, %v1098, %v948
      %vm1108 = vcmask 490496
      %v1109 = vsel %vm1108, %v1100, %v959
      %v1110 = vsel %vm1108, %v1101, %v961
      %v1111 = vsel %vm1108, %v1102, %v963
      %v1112 = vsel %vm1108, %v1103, %v965
      %v1113 = vsel %vm1108, %v1104, %v967
      %v1114 = vsel %vm1108, %v1105, %v969
      %v1115 = vsel %vm1108, %v1106, %v971
      %v1116 = vsel %vm1108, %v1107, %v973
      %v1118 = vrot.slane %v445, 1
      %v1119 = vrot.slane %v446, 1
      %v1120 = vsel %vm483, %v1118, %v1119
      %1121 = vrot.lane.b32.xlu0 %v789, 4
      %v1122 = vpop.permute.xlu0 %1121
      %1123 = vrot.lane.b32.xlu0 %v788, 4
      %v1124 = vpop.permute.xlu0 %1123
      %1125 = vrot.lane.b32.xlu0 %v792, 4
      %v1126 = vpop.permute.xlu0 %1125
      %1127 = vrot.lane.b32.xlu0 %v791, 4
      %v1128 = vpop.permute.xlu0 %1127
      %1129 = vrot.lane.b32.xlu0 %v795, 4
      %v1130 = vpop.permute.xlu0 %1129
      %1131 = vrot.lane.b32.xlu0 %v794, 4
      %v1132 = vpop.permute.xlu0 %1131
      %1133 = vrot.lane.b32.xlu0 %v798, 4
      %v1134 = vpop.permute.xlu0 %1133
      %1135 = vrot.lane.b32.xlu0 %v797, 4
      %v1136 = vpop.permute.xlu0 %1135
      %1137 = vrot.lane.b32.xlu0 %v801, 4
      %v1138 = vpop.permute.xlu0 %1137
      %1139 = vrot.lane.b32.xlu0 %v800, 4
      %v1140 = vpop.permute.xlu0 %1139
      %1141 = vrot.lane.b32.xlu0 %v804, 4
      %v1142 = vpop.permute.xlu0 %1141
      %1143 = vrot.lane.b32.xlu0 %v803, 4
      %v1144 = vpop.permute.xlu0 %1143
      %1145 = vrot.lane.b32.xlu0 %v905, 4
      %v1146 = vpop.permute.xlu0 %1145
      %1147 = vrot.lane.b32.xlu0 %v904, 4
      %v1148 = vpop.permute.xlu0 %1147
      %1149 = vrot.lane.b32.xlu0 %v1120, 4
      %v1150 = vpop.permute.xlu0 %1149
      %1151 = vrot.lane.b32.xlu0 %v1119, 4
      %v1152 = vpop.permute.xlu0 %1151
      %v1177 = vrot.slane %v447, 7
      %v1178 = vrot.slane %v449, 7
      %v1179 = vrot.slane %v451, 7
      %v1180 = vrot.slane %v453, 7
      %v1181 = vrot.slane %v455, 7
      %v1182 = vrot.slane %v457, 7
      %v1183 = vrot.slane %v459, 7
      %v1184 = vrot.slane %v461, 7
      %1185 = vrot.lane.b32.xlu0 %v1177, 8
      %v1186 = vpop.permute.xlu0 %1185
      %1187 = vrot.lane.b32.xlu0 %v1178, 8
      %v1188 = vpop.permute.xlu0 %1187
      %1189 = vrot.lane.b32.xlu0 %v1179, 8
      %v1190 = vpop.permute.xlu0 %1189
      %1191 = vrot.lane.b32.xlu0 %v1180, 8
      %v1192 = vpop.permute.xlu0 %1191
      %1193 = vrot.lane.b32.xlu0 %v1181, 8
      %v1194 = vpop.permute.xlu0 %1193
      %1195 = vrot.lane.b32.xlu0 %v1182, 8
      %v1196 = vpop.permute.xlu0 %1195
      %1197 = vrot.lane.b32.xlu0 %v1183, 8
      %v1198 = vpop.permute.xlu0 %1197
      %1199 = vrot.lane.b32.xlu0 %v1184, 8
      %v1200 = vpop.permute.xlu0 %1199
      %1217 = vrot.lane.b32.xlu0 %v447, 12
      %v1218 = vpop.permute.xlu0 %1217
      %1219 = vrot.lane.b32.xlu0 %v448, 12
      %v1220 = vpop.permute.xlu0 %1219
      %1221 = vrot.lane.b32.xlu0 %v449, 12
      %v1222 = vpop.permute.xlu0 %1221
      %1223 = vrot.lane.b32.xlu0 %v450, 12
      %v1224 = vpop.permute.xlu0 %1223
      %1225 = vrot.lane.b32.xlu0 %v451, 12
      %v1226 = vpop.permute.xlu0 %1225
      %1227 = vrot.lane.b32.xlu0 %v452, 12
      %v1228 = vpop.permute.xlu0 %1227
      %1229 = vrot.lane.b32.xlu0 %v453, 12
      %v1230 = vpop.permute.xlu0 %1229
      %1231 = vrot.lane.b32.xlu0 %v454, 12
      %v1232 = vpop.permute.xlu0 %1231
      %1233 = vrot.lane.b32.xlu0 %v455, 12
      %v1234 = vpop.permute.xlu0 %1233
      %1235 = vrot.lane.b32.xlu0 %v456, 12
      %v1236 = vpop.permute.xlu0 %1235
      %1237 = vrot.lane.b32.xlu0 %v457, 12
      %v1238 = vpop.permute.xlu0 %1237
      %1239 = vrot.lane.b32.xlu0 %v458, 12
      %v1240 = vpop.permute.xlu0 %1239
      %1241 = vrot.lane.b32.xlu0 %v459, 12
      %v1242 = vpop.permute.xlu0 %1241
      %1243 = vrot.lane.b32.xlu0 %v460, 12
      %v1244 = vpop.permute.xlu0 %1243
      %1245 = vrot.lane.b32.xlu0 %v461, 12
      %v1246 = vpop.permute.xlu0 %1245
      %1247 = vrot.lane.b32.xlu0 %v462, 12
      %v1248 = vpop.permute.xlu0 %1247
      %v1265 = vrot.slane %v447, 1
      %v1266 = vrot.slane %v448, 1
      %v1267 = vsel %vm483, %v1265, %v1266
      %v1268 = vrot.slane %v449, 1
      %v1269 = vrot.slane %v450, 1
      %v1270 = vsel %vm483, %v1268, %v1269
      %v1271 = vrot.slane %v451, 1
      %v1272 = vrot.slane %v452, 1
      %v1273 = vsel %vm483, %v1271, %v1272
      %v1274 = vrot.slane %v453, 1
      %v1275 = vrot.slane %v454, 1
      %v1276 = vsel %vm483, %v1274, %v1275
      %v1277 = vrot.slane %v455, 1
      %v1278 = vrot.slane %v456, 1
      %v1279 = vsel %vm483, %v1277, %v1278
      %v1280 = vrot.slane %v457, 1
      %v1281 = vrot.slane %v458, 1
      %v1282 = vsel %vm483, %v1280, %v1281
      %v1283 = vrot.slane %v459, 1
      %v1284 = vrot.slane %v460, 1
      %v1285 = vsel %vm483, %v1283, %v1284
      %v1286 = vrot.slane %v461, 1
      %v1287 = vrot.slane %v462, 1
      %v1288 = vsel %vm483, %v1286, %v1287
      %1289 = vrot.lane.b32.xlu0 %v1267, 16
      %v1290 = vpop.permute.xlu0 %1289
      %1291 = vrot.lane.b32.xlu0 %v1266, 16
      %v1292 = vpop.permute.xlu0 %1291
      %1293 = vrot.lane.b32.xlu0 %v1270, 16
      %v1294 = vpop.permute.xlu0 %1293
      %1295 = vrot.lane.b32.xlu0 %v1269, 16
      %v1296 = vpop.permute.xlu0 %1295
      %1297 = vrot.lane.b32.xlu0 %v1273, 16
      %v1298 = vpop.permute.xlu0 %1297
      %1299 = vrot.lane.b32.xlu0 %v1272, 16
      %v1300 = vpop.permute.xlu0 %1299
      %1301 = vrot.lane.b32.xlu0 %v1276, 16
      %v1302 = vpop.permute.xlu0 %1301
      %1303 = vrot.lane.b32.xlu0 %v1275, 16
      %v1304 = vpop.permute.xlu0 %1303
      %1305 = vrot.lane.b32.xlu0 %v1279, 16
      %v1306 = vpop.permute.xlu0 %1305
      %1307 = vrot.lane.b32.xlu0 %v1278, 16
      %v1308 = vpop.permute.xlu0 %1307
      %1309 = vrot.lane.b32.xlu0 %v1282, 16
      %v1310 = vpop.permute.xlu0 %1309
      %1311 = vrot.lane.b32.xlu0 %v1281, 16
      %v1312 = vpop.permute.xlu0 %1311
      %1313 = vrot.lane.b32.xlu0 %v1285, 16
      %v1314 = vpop.permute.xlu0 %1313
      %1315 = vrot.lane.b32.xlu0 %v1284, 16
      %v1316 = vpop.permute.xlu0 %1315
      %1317 = vrot.lane.b32.xlu0 %v1288, 16
      %v1318 = vpop.permute.xlu0 %1317
      %1319 = vrot.lane.b32.xlu0 %v1287, 16
      %v1320 = vpop.permute.xlu0 %1319
      %v1338 = vrot.slane %v463, 7
      %1339 = vrot.lane.b32.xlu0 %v1178, 20
      %v1340 = vpop.permute.xlu0 %1339
      %1341 = vrot.lane.b32.xlu0 %v1179, 20
      %v1342 = vpop.permute.xlu0 %1341
      %1343 = vrot.lane.b32.xlu0 %v1180, 20
      %v1344 = vpop.permute.xlu0 %1343
      %1345 = vrot.lane.b32.xlu0 %v1181, 20
      %v1346 = vpop.permute.xlu0 %1345
      %1347 = vrot.lane.b32.xlu0 %v1182, 20
      %v1348 = vpop.permute.xlu0 %1347
      %1349 = vrot.lane.b32.xlu0 %v1183, 20
      %v1350 = vpop.permute.xlu0 %1349
      %1351 = vrot.lane.b32.xlu0 %v1184, 20
      %v1352 = vpop.permute.xlu0 %1351
      %1353 = vrot.lane.b32.xlu0 %v1338, 20
      %v1354 = vpop.permute.xlu0 %1353
      %1364 = vrot.lane.b32.xlu0 %v449, 24
      %v1365 = vpop.permute.xlu0 %1364
      %1366 = vrot.lane.b32.xlu0 %v450, 24
      %v1367 = vpop.permute.xlu0 %1366
      %1368 = vrot.lane.b32.xlu0 %v451, 24
      %v1369 = vpop.permute.xlu0 %1368
      %1370 = vrot.lane.b32.xlu0 %v452, 24
      %v1371 = vpop.permute.xlu0 %1370
      %1372 = vrot.lane.b32.xlu0 %v453, 24
      %v1373 = vpop.permute.xlu0 %1372
      %1374 = vrot.lane.b32.xlu0 %v454, 24
      %v1375 = vpop.permute.xlu0 %1374
      %1376 = vrot.lane.b32.xlu0 %v455, 24
      %v1377 = vpop.permute.xlu0 %1376
      %1378 = vrot.lane.b32.xlu0 %v456, 24
      %v1379 = vpop.permute.xlu0 %1378
      %1380 = vrot.lane.b32.xlu0 %v457, 24
      %v1381 = vpop.permute.xlu0 %1380
      %1382 = vrot.lane.b32.xlu0 %v458, 24
      %v1383 = vpop.permute.xlu0 %1382
      %1384 = vrot.lane.b32.xlu0 %v459, 24
      %v1385 = vpop.permute.xlu0 %1384
      %1386 = vrot.lane.b32.xlu0 %v460, 24
      %v1387 = vpop.permute.xlu0 %1386
      %1388 = vrot.lane.b32.xlu0 %v461, 24
      %v1389 = vpop.permute.xlu0 %1388
      %1390 = vrot.lane.b32.xlu0 %v462, 24
      %v1391 = vpop.permute.xlu0 %1390
      %1392 = vrot.lane.b32.xlu0 %v463, 24
      %v1393 = vpop.permute.xlu0 %1392
      %1394 = vrot.lane.b32.xlu0 %v464, 24
      %v1395 = vpop.permute.xlu0 %1394
      %v1412 = vrot.slane %v463, 1
      %v1413 = vrot.slane %v464, 1
      %v1414 = vsel %vm483, %v1412, %v1413
      %1415 = vrot.lane.b32.xlu0 %v1270, 28
      %v1416 = vpop.permute.xlu0 %1415
      %1417 = vrot.lane.b32.xlu0 %v1269, 28
      %v1418 = vpop.permute.xlu0 %1417
      %1419 = vrot.lane.b32.xlu0 %v1273, 28
      %v1420 = vpop.permute.xlu0 %1419
      %1421 = vrot.lane.b32.xlu0 %v1272, 28
      %v1422 = vpop.permute.xlu0 %1421
      %1423 = vrot.lane.b32.xlu0 %v1276, 28
      %v1424 = vpop.permute.xlu0 %1423
      %1425 = vrot.lane.b32.xlu0 %v1275, 28
      %v1426 = vpop.permute.xlu0 %1425
      %1427 = vrot.lane.b32.xlu0 %v1279, 28
      %v1428 = vpop.permute.xlu0 %1427
      %1429 = vrot.lane.b32.xlu0 %v1278, 28
      %v1430 = vpop.permute.xlu0 %1429
      %1431 = vrot.lane.b32.xlu0 %v1282, 28
      %v1432 = vpop.permute.xlu0 %1431
      %1433 = vrot.lane.b32.xlu0 %v1281, 28
      %v1434 = vpop.permute.xlu0 %1433
      %1435 = vrot.lane.b32.xlu0 %v1285, 28
      %v1436 = vpop.permute.xlu0 %1435
      %1437 = vrot.lane.b32.xlu0 %v1284, 28
      %v1438 = vpop.permute.xlu0 %1437
      %1439 = vrot.lane.b32.xlu0 %v1288, 28
      %v1440 = vpop.permute.xlu0 %1439
      %1441 = vrot.lane.b32.xlu0 %v1287, 28
      %v1442 = vpop.permute.xlu0 %1441
      %1443 = vrot.lane.b32.xlu0 %v1414, 28
      %v1444 = vpop.permute.xlu0 %1443
      %1445 = vrot.lane.b32.xlu0 %v1413, 28
      %v1446 = vpop.permute.xlu0 %1445
      %v1464 = vrot.slane %v465, 7
      %1465 = vrot.lane.b32.xlu0 %v1179, 32
      %v1466 = vpop.permute.xlu0 %1465
      %1467 = vrot.lane.b32.xlu0 %v1180, 32
      %v1468 = vpop.permute.xlu0 %1467
      %1469 = vrot.lane.b32.xlu0 %v1181, 32
      %v1470 = vpop.permute.xlu0 %1469
      %1471 = vrot.lane.b32.xlu0 %v1182, 32
      %v1472 = vpop.permute.xlu0 %1471
      %1473 = vrot.lane.b32.xlu0 %v1183, 32
      %v1474 = vpop.permute.xlu0 %1473
      %1475 = vrot.lane.b32.xlu0 %v1184, 32
      %v1476 = vpop.permute.xlu0 %1475
      %1477 = vrot.lane.b32.xlu0 %v1338, 32
      %v1478 = vpop.permute.xlu0 %1477
      %1479 = vrot.lane.b32.xlu0 %v1464, 32
      %v1480 = vpop.permute.xlu0 %1479
      %1490 = vrot.lane.b32.xlu0 %v451, 36
      %v1491 = vpop.permute.xlu0 %1490
      %1492 = vrot.lane.b32.xlu0 %v452, 36
      %v1493 = vpop.permute.xlu0 %1492
      %1494 = vrot.lane.b32.xlu0 %v453, 36
      %v1495 = vpop.permute.xlu0 %1494
      %1496 = vrot.lane.b32.xlu0 %v454, 36
      %v1497 = vpop.permute.xlu0 %1496
      %1498 = vrot.lane.b32.xlu0 %v455, 36
      %v1499 = vpop.permute.xlu0 %1498
      %1500 = vrot.lane.b32.xlu0 %v456, 36
      %v1501 = vpop.permute.xlu0 %1500
      %1502 = vrot.lane.b32.xlu0 %v457, 36
      %v1503 = vpop.permute.xlu0 %1502
      %1504 = vrot.lane.b32.xlu0 %v458, 36
      %v1505 = vpop.permute.xlu0 %1504
      %1506 = vrot.lane.b32.xlu0 %v459, 36
      %v1507 = vpop.permute.xlu0 %1506
      %1508 = vrot.lane.b32.xlu0 %v460, 36
      %v1509 = vpop.permute.xlu0 %1508
      %1510 = vrot.lane.b32.xlu0 %v461, 36
      %v1511 = vpop.permute.xlu0 %1510
      %1512 = vrot.lane.b32.xlu0 %v462, 36
      %v1513 = vpop.permute.xlu0 %1512
      %1514 = vrot.lane.b32.xlu0 %v463, 36
      %v1515 = vpop.permute.xlu0 %1514
      %1516 = vrot.lane.b32.xlu0 %v464, 36
      %v1517 = vpop.permute.xlu0 %1516
      %1518 = vrot.lane.b32.xlu0 %v465, 36
      %v1519 = vpop.permute.xlu0 %1518
      %1520 = vrot.lane.b32.xlu0 %v466, 36
      %v1521 = vpop.permute.xlu0 %1520
      %v1538 = vrot.slane %v465, 1
      %v1539 = vrot.slane %v466, 1
      %v1540 = vsel %vm483, %v1538, %v1539
      %1541 = vrot.lane.b32.xlu0 %v1273, 40
      %v1542 = vpop.permute.xlu0 %1541
      %1543 = vrot.lane.b32.xlu0 %v1272, 40
      %v1544 = vpop.permute.xlu0 %1543
      %1545 = vrot.lane.b32.xlu0 %v1276, 40
      %v1546 = vpop.permute.xlu0 %1545
      %1547 = vrot.lane.b32.xlu0 %v1275, 40
      %v1548 = vpop.permute.xlu0 %1547
      %1549 = vrot.lane.b32.xlu0 %v1279, 40
      %v1550 = vpop.permute.xlu0 %1549
      %1551 = vrot.lane.b32.xlu0 %v1278, 40
      %v1552 = vpop.permute.xlu0 %1551
      %1553 = vrot.lane.b32.xlu0 %v1282, 40
      %v1554 = vpop.permute.xlu0 %1553
      %1555 = vrot.lane.b32.xlu0 %v1281, 40
      %v1556 = vpop.permute.xlu0 %1555
      %1557 = vrot.lane.b32.xlu0 %v1285, 40
      %v1558 = vpop.permute.xlu0 %1557
      %1559 = vrot.lane.b32.xlu0 %v1284, 40
      %v1560 = vpop.permute.xlu0 %1559
      %1561 = vrot.lane.b32.xlu0 %v1288, 40
      %v1562 = vpop.permute.xlu0 %1561
      %1563 = vrot.lane.b32.xlu0 %v1287, 40
      %v1564 = vpop.permute.xlu0 %1563
      %1565 = vrot.lane.b32.xlu0 %v1414, 40
      %v1566 = vpop.permute.xlu0 %1565
      %1567 = vrot.lane.b32.xlu0 %v1413, 40
      %v1568 = vpop.permute.xlu0 %1567
      %1569 = vrot.lane.b32.xlu0 %v1540, 40
      %v1570 = vpop.permute.xlu0 %1569
      %1571 = vrot.lane.b32.xlu0 %v1539, 40
      %v1572 = vpop.permute.xlu0 %1571
      %v1589 = vsel %vm982, %v431, %v1122
      %v1590 = vsel %vm982, %v432, %v1124
      %v1591 = vsel %vm982, %v433, %v1126
      %v1592 = vsel %vm982, %v434, %v1128
      %v1593 = vsel %vm982, %v435, %v1130
      %v1594 = vsel %vm982, %v436, %v1132
      %v1595 = vsel %vm982, %v437, %v1134
      %v1596 = vsel %vm982, %v438, %v1136
      %v1597 = vsel %vm982, %v439, %v1138
      %v1598 = vsel %vm982, %v440, %v1140
      %v1599 = vsel %vm982, %v441, %v1142
      %v1600 = vsel %vm982, %v442, %v1144
      %v1601 = vsel %vm982, %v443, %v1146
      %v1602 = vsel %vm982, %v444, %v1148
      %v1603 = vsel %vm982, %v445, %v1150
      %v1604 = vsel %vm982, %v446, %v1152
      %v1605 = vsel %vm991, %v1589, %v1186
      %v1606 = vsel %vm991, %v1590, %v1186
      %v1607 = vsel %vm991, %v1591, %v1188
      %v1608 = vsel %vm991, %v1592, %v1188
      %v1609 = vsel %vm991, %v1593, %v1190
      %v1610 = vsel %vm991, %v1594, %v1190
      %v1611 = vsel %vm991, %v1595, %v1192
      %v1612 = vsel %vm991, %v1596, %v1192
      %v1613 = vsel %vm991, %v1597, %v1194
      %v1614 = vsel %vm991, %v1598, %v1194
      %v1615 = vsel %vm991, %v1599, %v1196
      %v1616 = vsel %vm991, %v1600, %v1196
      %v1617 = vsel %vm991, %v1601, %v1198
      %v1618 = vsel %vm991, %v1602, %v1198
      %v1619 = vsel %vm991, %v1603, %v1200
      %v1620 = vsel %vm991, %v1604, %v1200
      %v1621 = vsel %vm1000, %v1605, %v1218
      %v1622 = vsel %vm1000, %v1606, %v1220
      %v1623 = vsel %vm1000, %v1607, %v1222
      %v1624 = vsel %vm1000, %v1608, %v1224
      %v1625 = vsel %vm1000, %v1609, %v1226
      %v1626 = vsel %vm1000, %v1610, %v1228
      %v1627 = vsel %vm1000, %v1611, %v1230
      %v1628 = vsel %vm1000, %v1612, %v1232
      %v1629 = vsel %vm1000, %v1613, %v1234
      %v1630 = vsel %vm1000, %v1614, %v1236
      %v1631 = vsel %vm1000, %v1615, %v1238
      %v1632 = vsel %vm1000, %v1616, %v1240
      %v1633 = vsel %vm1000, %v1617, %v1242
      %v1634 = vsel %vm1000, %v1618, %v1244
      %v1635 = vsel %vm1000, %v1619, %v1246
      %v1636 = vsel %vm1000, %v1620, %v1248
      %v1637 = vsel %vm1009, %v1621, %v1290
      %v1638 = vsel %vm1009, %v1622, %v1292
      %v1639 = vsel %vm1009, %v1623, %v1294
      %v1640 = vsel %vm1009, %v1624, %v1296
      %v1641 = vsel %vm1009, %v1625, %v1298
      %v1642 = vsel %vm1009, %v1626, %v1300
      %v1643 = vsel %vm1009, %v1627, %v1302
      %v1644 = vsel %vm1009, %v1628, %v1304
      %v1645 = vsel %vm1009, %v1629, %v1306
      %v1646 = vsel %vm1009, %v1630, %v1308
      %v1647 = vsel %vm1009, %v1631, %v1310
      %v1648 = vsel %vm1009, %v1632, %v1312
      %v1649 = vsel %vm1009, %v1633, %v1314
      %v1650 = vsel %vm1009, %v1634, %v1316
      %v1651 = vsel %vm1009, %v1635, %v1318
      %v1652 = vsel %vm1009, %v1636, %v1320
      %v1653 = vsel %vm1018, %v1637, %v1340
      %v1654 = vsel %vm1018, %v1638, %v1340
      %v1655 = vsel %vm1018, %v1639, %v1342
      %v1656 = vsel %vm1018, %v1640, %v1342
      %v1657 = vsel %vm1018, %v1641, %v1344
      %v1658 = vsel %vm1018, %v1642, %v1344
      %v1659 = vsel %vm1018, %v1643, %v1346
      %v1660 = vsel %vm1018, %v1644, %v1346
      %v1661 = vsel %vm1018, %v1645, %v1348
      %v1662 = vsel %vm1018, %v1646, %v1348
      %v1663 = vsel %vm1018, %v1647, %v1350
      %v1664 = vsel %vm1018, %v1648, %v1350
      %v1665 = vsel %vm1018, %v1649, %v1352
      %v1666 = vsel %vm1018, %v1650, %v1352
      %v1667 = vsel %vm1018, %v1651, %v1354
      %v1668 = vsel %vm1018, %v1652, %v1354
      %v1669 = vsel %vm1027, %v1653, %v1365
      %v1670 = vsel %vm1027, %v1654, %v1367
      %v1671 = vsel %vm1027, %v1655, %v1369
      %v1672 = vsel %vm1027, %v1656, %v1371
      %v1673 = vsel %vm1027, %v1657, %v1373
      %v1674 = vsel %vm1027, %v1658, %v1375
      %v1675 = vsel %vm1027, %v1659, %v1377
      %v1676 = vsel %vm1027, %v1660, %v1379
      %v1677 = vsel %vm1027, %v1661, %v1381
      %v1678 = vsel %vm1027, %v1662, %v1383
      %v1679 = vsel %vm1027, %v1663, %v1385
      %v1680 = vsel %vm1027, %v1664, %v1387
      %v1681 = vsel %vm1027, %v1665, %v1389
      %v1682 = vsel %vm1027, %v1666, %v1391
      %v1683 = vsel %vm1027, %v1667, %v1393
      %v1684 = vsel %vm1027, %v1668, %v1395
      %v1685 = vsel %vm1036, %v1669, %v1416
      %v1686 = vsel %vm1036, %v1670, %v1418
      %v1687 = vsel %vm1036, %v1671, %v1420
      %v1688 = vsel %vm1036, %v1672, %v1422
      %v1689 = vsel %vm1036, %v1673, %v1424
      %v1690 = vsel %vm1036, %v1674, %v1426
      %v1691 = vsel %vm1036, %v1675, %v1428
      %v1692 = vsel %vm1036, %v1676, %v1430
      %v1693 = vsel %vm1036, %v1677, %v1432
      %v1694 = vsel %vm1036, %v1678, %v1434
      %v1695 = vsel %vm1036, %v1679, %v1436
      %v1696 = vsel %vm1036, %v1680, %v1438
      %v1697 = vsel %vm1036, %v1681, %v1440
      %v1698 = vsel %vm1036, %v1682, %v1442
      %v1699 = vsel %vm1036, %v1683, %v1444
      %v1700 = vsel %vm1036, %v1684, %v1446
      %v1701 = vsel %vm1045, %v1685, %v1466
      %v1702 = vsel %vm1045, %v1686, %v1466
      %v1703 = vsel %vm1045, %v1687, %v1468
      %v1704 = vsel %vm1045, %v1688, %v1468
      %v1705 = vsel %vm1045, %v1689, %v1470
      %v1706 = vsel %vm1045, %v1690, %v1470
      %v1707 = vsel %vm1045, %v1691, %v1472
      %v1708 = vsel %vm1045, %v1692, %v1472
      %v1709 = vsel %vm1045, %v1693, %v1474
      %v1710 = vsel %vm1045, %v1694, %v1474
      %v1711 = vsel %vm1045, %v1695, %v1476
      %v1712 = vsel %vm1045, %v1696, %v1476
      %v1713 = vsel %vm1045, %v1697, %v1478
      %v1714 = vsel %vm1045, %v1698, %v1478
      %v1715 = vsel %vm1045, %v1699, %v1480
      %v1716 = vsel %vm1045, %v1700, %v1480
      %v1717 = vsel %vm1054, %v1701, %v1491
      %v1718 = vsel %vm1054, %v1702, %v1493
      %v1719 = vsel %vm1054, %v1703, %v1495
      %v1720 = vsel %vm1054, %v1704, %v1497
      %v1721 = vsel %vm1054, %v1705, %v1499
      %v1722 = vsel %vm1054, %v1706, %v1501
      %v1723 = vsel %vm1054, %v1707, %v1503
      %v1724 = vsel %vm1054, %v1708, %v1505
      %v1725 = vsel %vm1054, %v1709, %v1507
      %v1726 = vsel %vm1054, %v1710, %v1509
      %v1727 = vsel %vm1054, %v1711, %v1511
      %v1728 = vsel %vm1054, %v1712, %v1513
      %v1729 = vsel %vm1054, %v1713, %v1515
      %v1730 = vsel %vm1054, %v1714, %v1517
      %v1731 = vsel %vm1054, %v1715, %v1519
      %v1732 = vsel %vm1054, %v1716, %v1521
      %v1733 = vsel %vm1063, %v1717, %v1542
      %v1734 = vsel %vm1063, %v1718, %v1544
      %v1735 = vsel %vm1063, %v1719, %v1546
      %v1736 = vsel %vm1063, %v1720, %v1548
      %v1737 = vsel %vm1063, %v1721, %v1550
      %v1738 = vsel %vm1063, %v1722, %v1552
      %v1739 = vsel %vm1063, %v1723, %v1554
      %v1740 = vsel %vm1063, %v1724, %v1556
      %v1741 = vsel %vm1063, %v1725, %v1558
      %v1742 = vsel %vm1063, %v1726, %v1560
      %v1743 = vsel %vm1063, %v1727, %v1562
      %v1744 = vsel %vm1063, %v1728, %v1564
      %v1745 = vsel %vm1063, %v1729, %v1566
      %v1746 = vsel %vm1063, %v1730, %v1568
      %v1747 = vsel %vm1063, %v1731, %v1570
      %v1748 = vsel %vm1063, %v1732, %v1572
      %v1765 = vrot.slane %v1733, 1
      %v1766 = vrot.slane %v1734, 1
      %v1767 = vsel %vm483, %v1765, %v1766
      %v1768 = vrot.slane %v1735, 1
      %v1769 = vrot.slane %v1736, 1
      %v1770 = vsel %vm483, %v1768, %v1769
      %v1771 = vrot.slane %v1737, 1
      %v1772 = vrot.slane %v1738, 1
      %v1773 = vsel %vm483, %v1771, %v1772
      %v1774 = vrot.slane %v1739, 1
      %v1775 = vrot.slane %v1740, 1
      %v1776 = vsel %vm483, %v1774, %v1775
      %v1777 = vrot.slane %v1741, 1
      %v1778 = vrot.slane %v1742, 1
      %v1779 = vsel %vm483, %v1777, %v1778
      %v1780 = vrot.slane %v1743, 1
      %v1781 = vrot.slane %v1744, 1
      %v1782 = vsel %vm483, %v1780, %v1781
      %v1783 = vrot.slane %v1745, 1
      %v1784 = vrot.slane %v1746, 1
      %v1785 = vsel %vm483, %v1783, %v1784
      %v1786 = vrot.slane %v1747, 1
      %v1787 = vrot.slane %v1748, 1
      %v1788 = vsel %vm483, %v1786, %v1787
      %1789 = vrot.lane.b32.xlu0 %v1767, 64
      %v1790 = vpop.permute.xlu0 %1789
      %1791 = vrot.lane.b32.xlu0 %v1770, 64
      %v1792 = vpop.permute.xlu0 %1791
      %1793 = vrot.lane.b32.xlu0 %v1773, 64
      %v1794 = vpop.permute.xlu0 %1793
      %1795 = vrot.lane.b32.xlu0 %v1776, 64
      %v1796 = vpop.permute.xlu0 %1795
      %1797 = vrot.lane.b32.xlu0 %v1779, 64
      %v1798 = vpop.permute.xlu0 %1797
      %1799 = vrot.lane.b32.xlu0 %v1782, 64
      %v1800 = vpop.permute.xlu0 %1799
      %1801 = vrot.lane.b32.xlu0 %v1785, 64
      %v1802 = vpop.permute.xlu0 %1801
      %1803 = vrot.lane.b32.xlu0 %v1788, 64
      %v1804 = vpop.permute.xlu0 %1803
      %vm1813 = vcmask 523264
      %v1814 = vsel %vm1813, %v1109, %v1790
      %v1815 = vsel %vm1813, %v1110, %v1792
      %v1816 = vsel %vm1813, %v1111, %v1794
      %v1817 = vsel %vm1813, %v1112, %v1796
      %v1818 = vsel %vm1813, %v1113, %v1798
      %v1819 = vsel %vm1813, %v1114, %v1800
      %v1820 = vsel %vm1813, %v1115, %v1802
      %v1821 = vsel %vm1813, %v1116, %v1804
      %v1822 = vld [vmem:[%s3] sm:$0xff]
      %v1823 = vld [vmem:[%s3 + $0x8] sm:$0xff]
      %v1824 = vld [vmem:[%s3 + $0x10] sm:$0xff]
      %v1825 = vld [vmem:[%s3 + $0x18] sm:$0xff]
      %v1826 = vld [vmem:[%s3 + $0x20] sm:$0xff]
      %v1827 = vld [vmem:[%s3 + $0x28] sm:$0xff]
      %v1828 = vld [vmem:[%s3 + $0x30] sm:$0xff]
      %v1829 = vld [vmem:[%s3 + $0x38] sm:$0xff]
      %v1830 = vld [vmem:[%s3 + $0x40] sm:$0xff]
      %v1831 = vld [vmem:[%s3 + $0x48] sm:$0xff]
      %v1832 = vld [vmem:[%s3 + $0x50] sm:$0xff]
      %v1833 = vld [vmem:[%s3 + $0x58] sm:$0xff]
      %v1834 = vld [vmem:[%s3 + $0x60] sm:$0xff]
      %v1835 = vld [vmem:[%s3 + $0x68] sm:$0xf]
      %vm1836 = vcmask 883712
      %v1838 = vsel %vm1836, %v1814, 0
      %v1841 = vsel %vm1836, %v1815, 0
      %v1844 = vsel %vm1836, %v1816, 0
      %v1847 = vsel %vm1836, %v1817, 0
      %v1850 = vsel %vm1836, %v1818, 0
      %v1853 = vsel %vm1836, %v1819, 0
      %v1856 = vsel %vm1836, %v1820, 0
      %v1859 = vsel %vm1836, %v1821, 0
      %vm1861 = vcmask 1043456
      %v1863 = vsel %vm1861, %v1835, 0
      %1865 = vmatprep.subr.mxu0 0.0
      %1866 = vmatpush1.msra.mxu0 %v1822
      %1867 = vmatprep.subr.mxu0 0.0
      %1868 = vmatpush1.msra.mxu0 %v1823
      %1869 = vmatprep.subr.mxu0 0.0
      %1870 = vmatpush1.msra.mxu0 %v1824
      %1871 = vmatprep.subr.mxu0 0.0
      %1872 = vmatpush1.msra.mxu0 %v1825
      %1873 = vmatprep.subr.mxu0 0.0
      %1874 = vmatpush1.msra.mxu0 %v1826
      %1875 = vmatprep.subr.mxu0 0.0
      %1876 = vmatpush1.msra.mxu0 %v1827
      %1877 = vmatprep.subr.mxu0 0.0
      %1878 = vmatpush1.msra.mxu0 %v1828
      %1879 = vmatprep.subr.mxu0 0.0
      %1880 = vmatpush1.msra.mxu0 %v1829
      %1881 = vmatprep.subr.mxu0 0.0
      %1882 = vmatpush1.msra.mxu0 %v1830
      %1883 = vmatprep.subr.mxu0 0.0
      %1884 = vmatpush1.msra.mxu0 %v1831
      %1885 = vmatprep.subr.mxu0 0.0
      %1886 = vmatpush1.msra.mxu0 %v1832
      %1887 = vmatprep.subr.mxu0 0.0
      %1888 = vmatpush1.msra.mxu0 %v1833
      %1889 = vmatprep.subr.mxu0 0.0
      %1890 = vmatpush1.msra.mxu0 %v1834
      %1891 = vmatprep.subr.mxu0 0.0
      %1892 = vmatpush1.msra.mxu0 %v1863
      %1893 = vmatprep.subr.mxu0 0.0
      %1894 = vmatpush1.msra.mxu0 0.0
      %1895 = vmatprep.subr.mxu0 0.0
      %1896 = vmatpush1.msra.mxu0 0.0
      %1897 = vmatprep.subr.mxu0 0.0
      %1898 = vmatpush1.msra.mxu0 0.0
      %1899 = vmatprep.subr.mxu0 0.0
      %1900 = vmatpush1.msra.mxu0 0.0
      %1901 = vmatprep.subr.mxu0 0.0
      %1902 = vmatpush1.msra.mxu0 0.0
      %1903 = vmatprep.subr.mxu0 0.0
      %1904 = vmatpush1.msra.mxu0 0.0
      %1905 = vmatprep.subr.mxu0 0.0
      %1906 = vmatpush1.msra.mxu0 0.0
      %1907 = vmatprep.subr.mxu0 0.0
      %1908 = vmatpush1.msra.mxu0 0.0
      %1909 = vmatprep.subr.mxu0 0.0
      %1910 = vmatpush1.msra.mxu0 0.0
      %1911 = vmatprep.subr.mxu0 0.0
      %1912 = vmatpush1.msra.mxu0 0.0
      %1913 = vmatprep.subr.mxu0 0.0
      %1914 = vmatpush1.msra.mxu0 0.0
      %1915 = vmatprep.subr.mxu0 0.0
      %1916 = vmatpush1.msra.mxu0 0.0
      %1917 = vmatprep.subr.mxu0 0.0
      %1918 = vmatpush1.msra.mxu0 0.0
      %1919 = vmatprep.subr.mxu0 0.0
      %1920 = vmatpush1.msra.mxu0 0.0
      %1921 = vmatprep.subr.mxu0 0.0
      %1922 = vmatpush1.msra.mxu0 0.0
      %1923 = vmatprep.subr.mxu0 0.0
      %1924 = vmatpush1.msra.mxu0 0.0
      %1925 = vmatprep.subr.mxu0 0.0
      %1926 = vmatpush1.msra.mxu0 0.0
      %1927 = vmatprep.subr.mxu0 0.0
      %1928 = vmatpush1.msra.mxu0 0.0
      %1929 = vmatprep.mubr.f32.mxu0 0.0
      %1930 = vmatmul.mubr.f32.gmra.mrb[0].mxu0 %v1838
      %v1931 = vpop.f32.mrb[0].mxu0
      %v1932 = vadd.f32 0.0, %v1931
      %v1933 = vpop.f32.mrb[0].mxu0
      %1934 = vmatprep.mubr.f32.mxu0 0.0
      %1935 = vmatmul.mubr.f32.gmra.mrb[0].mxu0 %v1841
      %v1936 = vpop.f32.mrb[0].mxu0
      %v1937 = vadd.f32 0.0, %v1936
      %v1938 = vpop.f32.mrb[0].mxu0
      %1939 = vmatprep.mubr.f32.mxu0 0.0
      %1940 = vmatmul.mubr.f32.gmra.mrb[0].mxu0 %v1844
      %v1941 = vpop.f32.mrb[0].mxu0
      %v1942 = vadd.f32 0.0, %v1941
      %v1943 = vpop.f32.mrb[0].mxu0
      %1944 = vmatprep.mubr.f32.mxu0 0.0
      %1945 = vmatmul.mubr.f32.gmra.mrb[0].mxu0 %v1847
      %v1946 = vpop.f32.mrb[0].mxu0
      %v1947 = vadd.f32 0.0, %v1946
      %v1948 = vpop.f32.mrb[0].mxu0
      %1949 = vmatprep.mubr.f32.mxu0 0.0
      %1950 = vmatmul.mubr.f32.gmra.mrb[0].mxu0 %v1850
      %v1951 = vpop.f32.mrb[0].mxu0
      %v1952 = vadd.f32 0.0, %v1951
      %v1953 = vpop.f32.mrb[0].mxu0
      %1954 = vmatprep.mubr.f32.mxu0 0.0
      %1955 = vmatmul.mubr.f32.gmra.mrb[0].mxu0 %v1853
      %v1956 = vpop.f32.mrb[0].mxu0
      %v1957 = vadd.f32 0.0, %v1956
      %v1958 = vpop.f32.mrb[0].mxu0
      %1959 = vmatprep.mubr.f32.mxu0 0.0
      %1960 = vmatmul.mubr.f32.gmra.mrb[0].mxu0 %v1856
      %v1961 = vpop.f32.mrb[0].mxu0
      %v1962 = vadd.f32 0.0, %v1961
      %v1963 = vpop.f32.mrb[0].mxu0
      %1964 = vmatprep.mubr.f32.mxu0 0.0
      %1965 = vmatmul.mubr.f32.gmra.mrb[0].mxu0 %v1859
      %v1966 = vpop.f32.mrb[0].mxu0
      %v1967 = vadd.f32 0.0, %v1966
      %v1968 = vpop.f32.mrb[0].mxu0
      %1969 = vdwg.mxu0
      %1970 = vst.msk [vmem:[%s392] sm:$0xff] %vm991, %v1932
      %1971 = vst.msk [vmem:[%s392 + $0x8] sm:$0xff] %vm991, %v1937
      %1972 = vst.msk [vmem:[%s392 + $0x10] sm:$0xff] %vm991, %v1942
      %1973 = vst.msk [vmem:[%s392 + $0x18] sm:$0xff] %vm991, %v1947
      %1974 = vst.msk [vmem:[%s392 + $0x20] sm:$0xff] %vm991, %v1952
      %1975 = vst.msk [vmem:[%s392 + $0x28] sm:$0xff] %vm991, %v1957
      %1976 = vst.msk [vmem:[%s392 + $0x30] sm:$0xff] %vm991, %v1962
      %1977 = vst.msk [vmem:[%s392 + $0x38] sm:$0xff] %vm991, %v1967
      %v1978 = vsel %vm991, %v1932, 0.0
      %v1979 = vsel %vm991, %v1937, 0.0
      %v1980 = vadd.f32 %v1978, %v1979
      %v1981 = vsel %vm991, %v1942, 0.0
      %v1982 = vadd.f32 %v1980, %v1981
      %v1983 = vsel %vm991, %v1947, 0.0
      %v1984 = vadd.f32 %v1982, %v1983
      %v1985 = vsel %vm991, %v1952, 0.0
      %v1986 = vadd.f32 %v1984, %v1985
      %v1987 = vsel %vm991, %v1957, 0.0
      %v1988 = vadd.f32 %v1986, %v1987
      %v1989 = vsel %vm991, %v1962, 0.0
      %v1990 = vadd.f32 %v1988, %v1989
      %v1991 = vsel %vm991, %v1967, 0.0
      %v1992 = vadd.f32 %v1990, %v1991
      %v1993 = vrot.slane %v1992, 4
      %v1994 = vadd.f32 %v1992, %v1993
      %v1995 = vrot.slane %v1994, 2
      %v1996 = vadd.f32 %v1994, %v1995
      %v1997 = vrot.slane %v1996, 1
      %v1998 = vadd.f32 %v1996, %v1997
      %vm1999 = vcmask 57344
      %2000 = vst.msk [vmem:[%s399] sm:$0x1] %vm1999, %v1998
      %v2001 = vmul.f32 %v1932, %v1932
      %v2002 = vmul.f32 %v1937, %v1937
      %v2003 = vmul.f32 %v1942, %v1942
      %v2004 = vmul.f32 %v1947, %v1947
      %v2005 = vmul.f32 %v1952, %v1952
      %v2006 = vmul.f32 %v1957, %v1957
      %v2007 = vmul.f32 %v1962, %v1962
      %v2008 = vmul.f32 %v1967, %v1967
      %v2009 = vsel %vm991, %v2001, 0.0
      %v2010 = vsel %vm991, %v2002, 0.0
      %v2011 = vadd.f32 %v2009, %v2010
      %v2012 = vsel %vm991, %v2003, 0.0
      %v2013 = vadd.f32 %v2011, %v2012
      %v2014 = vsel %vm991, %v2004, 0.0
      %v2015 = vadd.f32 %v2013, %v2014
      %v2016 = vsel %vm991, %v2005, 0.0
      %v2017 = vadd.f32 %v2015, %v2016
      %v2018 = vsel %vm991, %v2006, 0.0
      %v2019 = vadd.f32 %v2017, %v2018
      %v2020 = vsel %vm991, %v2007, 0.0
      %v2021 = vadd.f32 %v2019, %v2020
      %v2022 = vsel %vm991, %v2008, 0.0
      %v2023 = vadd.f32 %v2021, %v2022
      %v2024 = vrot.slane %v2023, 4
      %v2025 = vadd.f32 %v2023, %v2024
      %v2026 = vrot.slane %v2025, 2
      %v2027 = vadd.f32 %v2025, %v2026
      %v2028 = vrot.slane %v2027, 1
      %v2029 = vadd.f32 %v2027, %v2028
      %2030 = vst.msk [vmem:[%s406] sm:$0x1] %vm1999, %v2029
      %p2031 = scmp.lt.s32.totalorder %s22, 1
      %s2032 = scalar_select %p2031, %s22, 1
      %p2033 = scmp.lt.s32.totalorder %s23, 3
      %s2034 = scalar_select %p2033, %s23, 3
      %s2035 = smul.addr %s2034, 8
      %s2036 = smul.addr %s2032, 32
      %s2037 = sadd.s32 %s2035, %s2036
      %s2038 = smul.addr %s2037, 8
      %s2039 = scalar_lea.vmem %s4, %s2038
      %p2040 = scmp.lt.s32.totalorder %s22, 1
      %s2041 = scalar_select %p2040, %s22, 1
      %p2042 = scmp.lt.s32.totalorder %s23, 3
      %s2043 = scalar_select %p2042, %s23, 3
      %s2044 = smul.addr %s2041, 4
      %s2045 = sadd.s32 %s2043, %s2044
      %s2046 = scalar_lea.vmem %s5, %s2045
      %p2047 = scmp.lt.s32.totalorder %s22, 1
      %s2048 = scalar_select %p2047, %s22, 1
      %p2049 = scmp.lt.s32.totalorder %s23, 3
      %s2050 = scalar_select %p2049, %s23, 3
      %s2051 = smul.addr %s2048, 4
      %s2052 = sadd.s32 %s2050, %s2051
      %s2053 = scalar_lea.vmem %s6, %s2052
      // Predicated region
      $region37: #{metric_block.2} parent=35 // pred_check
        %p2054 = pneg %p159
      $region38: #{metric_block.2} parent=35 // pred_check_branch
        %2056 = sbr.rel (%p2054) target = $region40
      $region39: #{metric_block.2} parent=35 // pred_region
        _
      $region40: #{metric_block.2} parent=35 // pred_fallthru
        _
      // Predicated region
      $region41: #{metric_block.2} parent=35 // pred_check
        %p2057 = pneg %p187
      $region42: #{metric_block.2} parent=35 // pred_check_branch
        %2059 = sbr.rel (%p2057) target = $region44
      $region43: #{metric_block.2} parent=35 // pred_region
        _
      $region44: #{metric_block.2} parent=35 // pred_fallthru
        _
      // Predicated region
      $region45: #{metric_block.2} parent=35 // pred_check
        %p2060 = pneg %p215
      $region46: #{metric_block.2} parent=35 // pred_check_branch
        %2062 = sbr.rel (%p2060) target = $region48
      $region47: #{metric_block.2} parent=35 // pred_region
        _
      $region48: #{metric_block.2} parent=35 // pred_fallthru
        _
    $region36: #{metric_block.2} parent=5 // pred_fallthru
      _
    %p2063 = scmp.le.s32.totalorder 2, %s13
    // Predicated region
    $region49: #{metric_block.2} parent=5 // pred_check
      %p2064 = pneg %p2063
    $region50: #{metric_block.2} parent=5 // pred_check_branch
      %2066 = sbr.rel (%p2064) target = $region52
    $region51: #{metric_block.2} parent=5 // pred_region
      %s2067 = ssub.s32 %s13, 2
      // Predicated region
      $region53: #{metric_block.2} parent=51 // pred_check
        %p2068 = pneg %p165
      $region54: #{metric_block.2} parent=51 // pred_check_branch
        %2070 = sbr.rel (%p2068) target = $region56
      $region55: #{metric_block.2} parent=51 // pred_region
        %p2071 = scmp.lt.s32.totalorder %s24, 1
        %s2072 = scalar_select %p2071, %s24, 1
        %p2073 = scmp.lt.s32.totalorder %s25, 3
        %s2074 = scalar_select %p2073, %s25, 3
        %s2075 = smul.addr %s2074, 8
        %s2076 = smul.addr %s2072, 32
        %s2077 = sadd.s32 %s2075, %s2076
        %s2078 = smul.addr %s2077, 8
        %s2079 = scalar_lea.vmem %s4, %s2078
      $region56: #{metric_block.2} parent=51 // pred_fallthru
        _
      // Predicated region
      $region57: #{metric_block.2} parent=51 // pred_check
        %p2080 = pneg %p193
      $region58: #{metric_block.2} parent=51 // pred_check_branch
        %2082 = sbr.rel (%p2080) target = $region60
      $region59: #{metric_block.2} parent=51 // pred_region
        %p2083 = scmp.lt.s32.totalorder %s24, 1
        %s2084 = scalar_select %p2083, %s24, 1
        %p2085 = scmp.lt.s32.totalorder %s25, 3
        %s2086 = scalar_select %p2085, %s25, 3
        %s2087 = smul.addr %s2084, 4
        %s2088 = sadd.s32 %s2086, %s2087
        %s2089 = scalar_lea.vmem %s5, %s2088
      $region60: #{metric_block.2} parent=51 // pred_fallthru
        _
      // Predicated region
      $region61: #{metric_block.2} parent=51 // pred_check
        %p2090 = pneg %p221
      $region62: #{metric_block.2} parent=51 // pred_check_branch
        %2092 = sbr.rel (%p2090) target = $region64
      $region63: #{metric_block.2} parent=51 // pred_region
        %p2093 = scmp.lt.s32.totalorder %s24, 1
        %s2094 = scalar_select %p2093, %s24, 1
        %p2095 = scmp.lt.s32.totalorder %s25, 3
        %s2096 = scalar_select %p2095, %s25, 3
        %s2097 = smul.addr %s2094, 4
        %s2098 = sadd.s32 %s2096, %s2097
        %s2099 = scalar_lea.vmem %s6, %s2098
      $region64: #{metric_block.2} parent=51 // pred_fallthru
        _
    $region52: #{metric_block.2} parent=5 // pred_fallthru
      _
  $region6: #{metric_block.2} parent=0 // loop_footer
    %s17 = sadd.s32 1, %s13
  $region7: #{metric_block.2} parent=0 // loop_footer_branch
    %12 = sbr.rel target = $region3
  $region8: #{metric_block.2} parent=0 // loop_exit
    _

// kernel: metric_block.3
$region0: #{metric_block.3}
  #allocation0 [shape = 'u32[]', space=smem, size = 0x4, offset = 0x4, fixed_abs, tag = 'smem constant byte address 0x4 - core index']
  #allocation1 [shape = 'u32[144,128]{1,0:T(1,128)}', space=vmem, size = 0x12000, scoped, tag = 'internal scratch']
  %s0 = inlined_call_operand.vmem [shape: f32[512,8], index: 0, kind: input, shape index: {}]
  %s1 = inlined_call_operand.vmem [shape: f32[1,8], index: 1, kind: input, shape index: {}]
  %s2 = inlined_call_operand.vmem [shape: f32[1,8], index: 2, kind: input, shape index: {}]
  %s3 = inlined_call_operand.hbm [shape: f32[512,8], index: 3, kind: output, shape index: {}]
  %s4 = sld [smem:[#allocation0]]
  $region22: #{metric_block.3} parent=0
    _
  %s6 = ssub.s32 1, %s4
  %s7 = scalar_select 0, %s6, %s4
  $region1: #{metric_block.3} parent=0
    #allocation2 [shape = 'u8[262144]{0}', space=vmem, size = 0x40000, scoped, tag = 'output window, operand 0, single buffered']
    #allocation3 [shape = 's32[1]{0}', space=sflag, size = 0x4, scoped, tag = 'scoped memory for metric_block.3']
    %8 = vsyncpa [#allocation3], 0
    // Predicated region
    $region2: #{metric_block.3} parent=1 // pred_check
      _
    $region3: #{metric_block.3} parent=1 // pred_check_branch
      %10 = sbr.rel (0) target = $region5
    $region4: #{metric_block.3} parent=1 // pred_region
      _
    $region5: #{metric_block.3} parent=1 // pred_fallthru
      _
    // Predicated region
    $region6: #{metric_block.3} parent=1 // pred_check
      _
    $region7: #{metric_block.3} parent=1 // pred_check_branch
      %12 = sbr.rel (0) target = $region9
    $region8: #{metric_block.3} parent=1 // pred_region
      _
    $region9: #{metric_block.3} parent=1 // pred_fallthru
      _
    // Predicated region
    $region10: #{metric_block.3} parent=1 // pred_check
      _
    $region11: #{metric_block.3} parent=1 // pred_check_branch
      %14 = sbr.rel (0) target = $region13
    $region12: #{metric_block.3} parent=1 // pred_region
      _
    $region13: #{metric_block.3} parent=1 // pred_fallthru
      _
    %v15 = vld [vmem:[%s0] sm:$0xff]
    %v16 = vld [vmem:[%s0 + $0x8] sm:$0xff]
    %v17 = vld [vmem:[%s0 + $0x10] sm:$0xff]
    %v18 = vld [vmem:[%s0 + $0x18] sm:$0xff]
    %v19 = vld [vmem:[%s0 + $0x20] sm:$0xff]
    %v20 = vld [vmem:[%s0 + $0x28] sm:$0xff]
    %v21 = vld [vmem:[%s0 + $0x30] sm:$0xff]
    %v22 = vld [vmem:[%s0 + $0x38] sm:$0xff]
    %v23 = vld [vmem:[%s0 + $0x40] sm:$0xff]
    %v24 = vld [vmem:[%s0 + $0x48] sm:$0xff]
    %v25 = vld [vmem:[%s0 + $0x50] sm:$0xff]
    %v26 = vld [vmem:[%s0 + $0x58] sm:$0xff]
    %v27 = vld [vmem:[%s0 + $0x60] sm:$0xff]
    %v28 = vld [vmem:[%s0 + $0x68] sm:$0xff]
    %v29 = vld [vmem:[%s0 + $0x70] sm:$0xff]
    %v30 = vld [vmem:[%s0 + $0x78] sm:$0xff]
    %v31 = vld [vmem:[%s0 + $0x80] sm:$0xff]
    %v32 = vld [vmem:[%s0 + $0x88] sm:$0xff]
    %v33 = vld [vmem:[%s0 + $0x90] sm:$0xff]
    %v34 = vld [vmem:[%s0 + $0x98] sm:$0xff]
    %v35 = vld [vmem:[%s0 + $0xa0] sm:$0xff]
    %v36 = vld [vmem:[%s0 + $0xa8] sm:$0xff]
    %v37 = vld [vmem:[%s0 + $0xb0] sm:$0xff]
    %v38 = vld [vmem:[%s0 + $0xb8] sm:$0xff]
    %v39 = vld [vmem:[%s0 + $0xc0] sm:$0xff]
    %v40 = vld [vmem:[%s0 + $0xc8] sm:$0xff]
    %v41 = vld [vmem:[%s0 + $0xd0] sm:$0xff]
    %v42 = vld [vmem:[%s0 + $0xd8] sm:$0xff]
    %v43 = vld [vmem:[%s0 + $0xe0] sm:$0xff]
    %v44 = vld [vmem:[%s0 + $0xe8] sm:$0xff]
    %v45 = vld [vmem:[%s0 + $0xf0] sm:$0xff]
    %v46 = vld [vmem:[%s0 + $0xf8] sm:$0xff]
    %v47 = vld [vmem:[%s0 + $0x100] sm:$0xff]
    %v48 = vld [vmem:[%s0 + $0x108] sm:$0xff]
    %v49 = vld [vmem:[%s0 + $0x110] sm:$0xff]
    %v50 = vld [vmem:[%s0 + $0x118] sm:$0xff]
    %v51 = vld [vmem:[%s0 + $0x120] sm:$0xff]
    %v52 = vld [vmem:[%s0 + $0x128] sm:$0xff]
    %v53 = vld [vmem:[%s0 + $0x130] sm:$0xff]
    %v54 = vld [vmem:[%s0 + $0x138] sm:$0xff]
    %v55 = vld [vmem:[%s0 + $0x140] sm:$0xff]
    %v56 = vld [vmem:[%s0 + $0x148] sm:$0xff]
    %v57 = vld [vmem:[%s0 + $0x150] sm:$0xff]
    %v58 = vld [vmem:[%s0 + $0x158] sm:$0xff]
    %v59 = vld [vmem:[%s0 + $0x160] sm:$0xff]
    %v60 = vld [vmem:[%s0 + $0x168] sm:$0xff]
    %v61 = vld [vmem:[%s0 + $0x170] sm:$0xff]
    %v62 = vld [vmem:[%s0 + $0x178] sm:$0xff]
    %v63 = vld [vmem:[%s0 + $0x180] sm:$0xff]
    %v64 = vld [vmem:[%s0 + $0x188] sm:$0xff]
    %v65 = vld [vmem:[%s0 + $0x190] sm:$0xff]
    %v66 = vld [vmem:[%s0 + $0x198] sm:$0xff]
    %v67 = vld [vmem:[%s0 + $0x1a0] sm:$0xff]
    %v68 = vld [vmem:[%s0 + $0x1a8] sm:$0xff]
    %v69 = vld [vmem:[%s0 + $0x1b0] sm:$0xff]
    %v70 = vld [vmem:[%s0 + $0x1b8] sm:$0xff]
    %v71 = vld [vmem:[%s0 + $0x1c0] sm:$0xff]
    %v72 = vld [vmem:[%s0 + $0x1c8] sm:$0xff]
    %v73 = vld [vmem:[%s0 + $0x1d0] sm:$0xff]
    %v74 = vld [vmem:[%s0 + $0x1d8] sm:$0xff]
    %v75 = vld [vmem:[%s0 + $0x1e0] sm:$0xff]
    %v76 = vld [vmem:[%s0 + $0x1e8] sm:$0xff]
    %v77 = vld [vmem:[%s0 + $0x1f0] sm:$0xff]
    %v78 = vld [vmem:[%s0 + $0x1f8] sm:$0xff]
    %v79 = vld [vmem:[%s1] sm:$0x1]
    %v81 = vlaneseq
    %v82 = vshrl.u32 %v81, 7
    %v83 = vsub.s32 0, %v82
    %v84 = vrot.slane %v79, %v83
    %v86 = vmul.f32 %v15, %v84
    %v87 = vmul.f32 %v16, %v84
    %v88 = vmul.f32 %v17, %v84
    %v89 = vmul.f32 %v18, %v84
    %v90 = vmul.f32 %v19, %v84
    %v91 = vmul.f32 %v20, %v84
    %v92 = vmul.f32 %v21, %v84
    %v93 = vmul.f32 %v22, %v84
    %v94 = vmul.f32 %v23, %v84
    %v95 = vmul.f32 %v24, %v84
    %v96 = vmul.f32 %v25, %v84
    %v97 = vmul.f32 %v26, %v84
    %v98 = vmul.f32 %v27, %v84
    %v99 = vmul.f32 %v28, %v84
    %v100 = vmul.f32 %v29, %v84
    %v101 = vmul.f32 %v30, %v84
    %v102 = vmul.f32 %v31, %v84
    %v103 = vmul.f32 %v32, %v84
    %v104 = vmul.f32 %v33, %v84
    %v105 = vmul.f32 %v34, %v84
    %v106 = vmul.f32 %v35, %v84
    %v107 = vmul.f32 %v36, %v84
    %v108 = vmul.f32 %v37, %v84
    %v109 = vmul.f32 %v38, %v84
    %v110 = vmul.f32 %v39, %v84
    %v111 = vmul.f32 %v40, %v84
    %v112 = vmul.f32 %v41, %v84
    %v113 = vmul.f32 %v42, %v84
    %v114 = vmul.f32 %v43, %v84
    %v115 = vmul.f32 %v44, %v84
    %v116 = vmul.f32 %v45, %v84
    %v117 = vmul.f32 %v46, %v84
    %v118 = vmul.f32 %v47, %v84
    %v119 = vmul.f32 %v48, %v84
    %v120 = vmul.f32 %v49, %v84
    %v121 = vmul.f32 %v50, %v84
    %v122 = vmul.f32 %v51, %v84
    %v123 = vmul.f32 %v52, %v84
    %v124 = vmul.f32 %v53, %v84
    %v125 = vmul.f32 %v54, %v84
    %v126 = vmul.f32 %v55, %v84
    %v127 = vmul.f32 %v56, %v84
    %v128 = vmul.f32 %v57, %v84
    %v129 = vmul.f32 %v58, %v84
    %v130 = vmul.f32 %v59, %v84
    %v131 = vmul.f32 %v60, %v84
    %v132 = vmul.f32 %v61, %v84
    %v133 = vmul.f32 %v62, %v84
    %v134 = vmul.f32 %v63, %v84
    %v135 = vmul.f32 %v64, %v84
    %v136 = vmul.f32 %v65, %v84
    %v137 = vmul.f32 %v66, %v84
    %v138 = vmul.f32 %v67, %v84
    %v139 = vmul.f32 %v68, %v84
    %v140 = vmul.f32 %v69, %v84
    %v141 = vmul.f32 %v70, %v84
    %v142 = vmul.f32 %v71, %v84
    %v143 = vmul.f32 %v72, %v84
    %v144 = vmul.f32 %v73, %v84
    %v145 = vmul.f32 %v74, %v84
    %v146 = vmul.f32 %v75, %v84
    %v147 = vmul.f32 %v76, %v84
    %v148 = vmul.f32 %v77, %v84
    %v149 = vmul.f32 %v78, %v84
    %v150 = vld [vmem:[%s2] sm:$0x1]
    %v152 = vlaneseq
    %v153 = vshrl.u32 %v152, 7
    %v154 = vsub.s32 0, %v153
    %v155 = vrot.slane %v150, %v154
    %v157 = vadd.f32 %v86, %v155
    %v158 = vadd.f32 %v87, %v155
    %v159 = vadd.f32 %v88, %v155
    %v160 = vadd.f32 %v89, %v155
    %v161 = vadd.f32 %v90, %v155
    %v162 = vadd.f32 %v91, %v155
    %v163 = vadd.f32 %v92, %v155
    %v164 = vadd.f32 %v93, %v155
    %v165 = vadd.f32 %v94, %v155
    %v166 = vadd.f32 %v95, %v155
    %v167 = vadd.f32 %v96, %v155
    %v168 = vadd.f32 %v97, %v155
    %v169 = vadd.f32 %v98, %v155
    %v170 = vadd.f32 %v99, %v155
    %v171 = vadd.f32 %v100, %v155
    %v172 = vadd.f32 %v101, %v155
    %v173 = vadd.f32 %v102, %v155
    %v174 = vadd.f32 %v103, %v155
    %v175 = vadd.f32 %v104, %v155
    %v176 = vadd.f32 %v105, %v155
    %v177 = vadd.f32 %v106, %v155
    %v178 = vadd.f32 %v107, %v155
    %v179 = vadd.f32 %v108, %v155
    %v180 = vadd.f32 %v109, %v155
    %v181 = vadd.f32 %v110, %v155
    %v182 = vadd.f32 %v111, %v155
    %v183 = vadd.f32 %v112, %v155
    %v184 = vadd.f32 %v113, %v155
    %v185 = vadd.f32 %v114, %v155
    %v186 = vadd.f32 %v115, %v155
    %v187 = vadd.f32 %v116, %v155
    %v188 = vadd.f32 %v117, %v155
    %v189 = vadd.f32 %v118, %v155
    %v190 = vadd.f32 %v119, %v155
    %v191 = vadd.f32 %v120, %v155
    %v192 = vadd.f32 %v121, %v155
    %v193 = vadd.f32 %v122, %v155
    %v194 = vadd.f32 %v123, %v155
    %v195 = vadd.f32 %v124, %v155
    %v196 = vadd.f32 %v125, %v155
    %v197 = vadd.f32 %v126, %v155
    %v198 = vadd.f32 %v127, %v155
    %v199 = vadd.f32 %v128, %v155
    %v200 = vadd.f32 %v129, %v155
    %v201 = vadd.f32 %v130, %v155
    %v202 = vadd.f32 %v131, %v155
    %v203 = vadd.f32 %v132, %v155
    %v204 = vadd.f32 %v133, %v155
    %v205 = vadd.f32 %v134, %v155
    %v206 = vadd.f32 %v135, %v155
    %v207 = vadd.f32 %v136, %v155
    %v208 = vadd.f32 %v137, %v155
    %v209 = vadd.f32 %v138, %v155
    %v210 = vadd.f32 %v139, %v155
    %v211 = vadd.f32 %v140, %v155
    %v212 = vadd.f32 %v141, %v155
    %v213 = vadd.f32 %v142, %v155
    %v214 = vadd.f32 %v143, %v155
    %v215 = vadd.f32 %v144, %v155
    %v216 = vadd.f32 %v145, %v155
    %v217 = vadd.f32 %v146, %v155
    %v218 = vadd.f32 %v147, %v155
    %v219 = vadd.f32 %v148, %v155
    %v220 = vadd.f32 %v149, %v155
    %vm221 = vcmp.gt.f32.partialorder %v157, 0.0
    %vm222 = vcmp.gt.f32.partialorder %v158, 0.0
    %vm223 = vcmp.gt.f32.partialorder %v159, 0.0
    %vm224 = vcmp.gt.f32.partialorder %v160, 0.0
    %vm225 = vcmp.gt.f32.partialorder %v161, 0.0
    %vm226 = vcmp.gt.f32.partialorder %v162, 0.0
    %vm227 = vcmp.gt.f32.partialorder %v163, 0.0
    %vm228 = vcmp.gt.f32.partialorder %v164, 0.0
    %vm229 = vcmp.gt.f32.partialorder %v165, 0.0
    %vm230 = vcmp.gt.f32.partialorder %v166, 0.0
    %vm231 = vcmp.gt.f32.partialorder %v167, 0.0
    %vm232 = vcmp.gt.f32.partialorder %v168, 0.0
    %vm233 = vcmp.gt.f32.partialorder %v169, 0.0
    %vm234 = vcmp.gt.f32.partialorder %v170, 0.0
    %vm235 = vcmp.gt.f32.partialorder %v171, 0.0
    %vm236 = vcmp.gt.f32.partialorder %v172, 0.0
    %vm237 = vcmp.gt.f32.partialorder %v173, 0.0
    %vm238 = vcmp.gt.f32.partialorder %v174, 0.0
    %vm239 = vcmp.gt.f32.partialorder %v175, 0.0
    %vm240 = vcmp.gt.f32.partialorder %v176, 0.0
    %vm241 = vcmp.gt.f32.partialorder %v177, 0.0
    %vm242 = vcmp.gt.f32.partialorder %v178, 0.0
    %vm243 = vcmp.gt.f32.partialorder %v179, 0.0
    %vm244 = vcmp.gt.f32.partialorder %v180, 0.0
    %vm245 = vcmp.gt.f32.partialorder %v181, 0.0
    %vm246 = vcmp.gt.f32.partialorder %v182, 0.0
    %vm247 = vcmp.gt.f32.partialorder %v183, 0.0
    %vm248 = vcmp.gt.f32.partialorder %v184, 0.0
    %vm249 = vcmp.gt.f32.partialorder %v185, 0.0
    %vm250 = vcmp.gt.f32.partialorder %v186, 0.0
    %vm251 = vcmp.gt.f32.partialorder %v187, 0.0
    %vm252 = vcmp.gt.f32.partialorder %v188, 0.0
    %vm253 = vcmp.gt.f32.partialorder %v189, 0.0
    %vm254 = vcmp.gt.f32.partialorder %v190, 0.0
    %vm255 = vcmp.gt.f32.partialorder %v191, 0.0
    %vm256 = vcmp.gt.f32.partialorder %v192, 0.0
    %vm257 = vcmp.gt.f32.partialorder %v193, 0.0
    %vm258 = vcmp.gt.f32.partialorder %v194, 0.0
    %vm259 = vcmp.gt.f32.partialorder %v195, 0.0
    %vm260 = vcmp.gt.f32.partialorder %v196, 0.0
    %vm261 = vcmp.gt.f32.partialorder %v197, 0.0
    %vm262 = vcmp.gt.f32.partialorder %v198, 0.0
    %vm263 = vcmp.gt.f32.partialorder %v199, 0.0
    %vm264 = vcmp.gt.f32.partialorder %v200, 0.0
    %vm265 = vcmp.gt.f32.partialorder %v201, 0.0
    %vm266 = vcmp.gt.f32.partialorder %v202, 0.0
    %vm267 = vcmp.gt.f32.partialorder %v203, 0.0
    %vm268 = vcmp.gt.f32.partialorder %v204, 0.0
    %vm269 = vcmp.gt.f32.partialorder %v205, 0.0
    %vm270 = vcmp.gt.f32.partialorder %v206, 0.0
    %vm271 = vcmp.gt.f32.partialorder %v207, 0.0
    %vm272 = vcmp.gt.f32.partialorder %v208, 0.0
    %vm273 = vcmp.gt.f32.partialorder %v209, 0.0
    %vm274 = vcmp.gt.f32.partialorder %v210, 0.0
    %vm275 = vcmp.gt.f32.partialorder %v211, 0.0
    %vm276 = vcmp.gt.f32.partialorder %v212, 0.0
    %vm277 = vcmp.gt.f32.partialorder %v213, 0.0
    %vm278 = vcmp.gt.f32.partialorder %v214, 0.0
    %vm279 = vcmp.gt.f32.partialorder %v215, 0.0
    %vm280 = vcmp.gt.f32.partialorder %v216, 0.0
    %vm281 = vcmp.gt.f32.partialorder %v217, 0.0
    %vm282 = vcmp.gt.f32.partialorder %v218, 0.0
    %vm283 = vcmp.gt.f32.partialorder %v219, 0.0
    %vm284 = vcmp.gt.f32.partialorder %v220, 0.0
    %v285 = vmul.f32 %v157, 0.01
    %v286 = vmul.f32 %v158, 0.01
    %v287 = vmul.f32 %v159, 0.01
    %v288 = vmul.f32 %v160, 0.01
    %v289 = vmul.f32 %v161, 0.01
    %v290 = vmul.f32 %v162, 0.01
    %v291 = vmul.f32 %v163, 0.01
    %v292 = vmul.f32 %v164, 0.01
    %v293 = vmul.f32 %v165, 0.01
    %v294 = vmul.f32 %v166, 0.01
    %v295 = vmul.f32 %v167, 0.01
    %v296 = vmul.f32 %v168, 0.01
    %v297 = vmul.f32 %v169, 0.01
    %v298 = vmul.f32 %v170, 0.01
    %v299 = vmul.f32 %v171, 0.01
    %v300 = vmul.f32 %v172, 0.01
    %v301 = vmul.f32 %v173, 0.01
    %v302 = vmul.f32 %v174, 0.01
    %v303 = vmul.f32 %v175, 0.01
    %v304 = vmul.f32 %v176, 0.01
    %v305 = vmul.f32 %v177, 0.01
    %v306 = vmul.f32 %v178, 0.01
    %v307 = vmul.f32 %v179, 0.01
    %v308 = vmul.f32 %v180, 0.01
    %v309 = vmul.f32 %v181, 0.01
    %v310 = vmul.f32 %v182, 0.01
    %v311 = vmul.f32 %v183, 0.01
    %v312 = vmul.f32 %v184, 0.01
    %v313 = vmul.f32 %v185, 0.01
    %v314 = vmul.f32 %v186, 0.01
    %v315 = vmul.f32 %v187, 0.01
    %v316 = vmul.f32 %v188, 0.01
    %v317 = vmul.f32 %v189, 0.01
    %v318 = vmul.f32 %v190, 0.01
    %v319 = vmul.f32 %v191, 0.01
    %v320 = vmul.f32 %v192, 0.01
    %v321 = vmul.f32 %v193, 0.01
    %v322 = vmul.f32 %v194, 0.01
    %v323 = vmul.f32 %v195, 0.01
    %v324 = vmul.f32 %v196, 0.01
    %v325 = vmul.f32 %v197, 0.01
    %v326 = vmul.f32 %v198, 0.01
    %v327 = vmul.f32 %v199, 0.01
    %v328 = vmul.f32 %v200, 0.01
    %v329 = vmul.f32 %v201, 0.01
    %v330 = vmul.f32 %v202, 0.01
    %v331 = vmul.f32 %v203, 0.01
    %v332 = vmul.f32 %v204, 0.01
    %v333 = vmul.f32 %v205, 0.01
    %v334 = vmul.f32 %v206, 0.01
    %v335 = vmul.f32 %v207, 0.01
    %v336 = vmul.f32 %v208, 0.01
    %v337 = vmul.f32 %v209, 0.01
    %v338 = vmul.f32 %v210, 0.01
    %v339 = vmul.f32 %v211, 0.01
    %v340 = vmul.f32 %v212, 0.01
    %v341 = vmul.f32 %v213, 0.01
    %v342 = vmul.f32 %v214, 0.01
    %v343 = vmul.f32 %v215, 0.01
    %v344 = vmul.f32 %v216, 0.01
    %v345 = vmul.f32 %v217, 0.01
    %v346 = vmul.f32 %v218, 0.01
    %v347 = vmul.f32 %v219, 0.01
    %v348 = vmul.f32 %v220, 0.01
    %v349 = vsel %vm221, %v157, %v285
    %v350 = vsel %vm222, %v158, %v286
    %v351 = vsel %vm223, %v159, %v287
    %v352 = vsel %vm224, %v160, %v288
    %v353 = vsel %vm225, %v161, %v289
    %v354 = vsel %vm226, %v162, %v290
    %v355 = vsel %vm227, %v163, %v291
    %v356 = vsel %vm228, %v164, %v292
    %v357 = vsel %vm229, %v165, %v293
    %v358 = vsel %vm230, %v166, %v294
    %v359 = vsel %vm231, %v167, %v295
    %v360 = vsel %vm232, %v168, %v296
    %v361 = vsel %vm233, %v169, %v297
    %v362 = vsel %vm234, %v170, %v298
    %v363 = vsel %vm235, %v171, %v299
    %v364 = vsel %vm236, %v172, %v300
    %v365 = vsel %vm237, %v173, %v301
    %v366 = vsel %vm238, %v174, %v302
    %v367 = vsel %vm239, %v175, %v303
    %v368 = vsel %vm240, %v176, %v304
    %v369 = vsel %vm241, %v177, %v305
    %v370 = vsel %vm242, %v178, %v306
    %v371 = vsel %vm243, %v179, %v307
    %v372 = vsel %vm244, %v180, %v308
    %v373 = vsel %vm245, %v181, %v309
    %v374 = vsel %vm246, %v182, %v310
    %v375 = vsel %vm247, %v183, %v311
    %v376 = vsel %vm248, %v184, %v312
    %v377 = vsel %vm249, %v185, %v313
    %v378 = vsel %vm250, %v186, %v314
    %v379 = vsel %vm251, %v187, %v315
    %v380 = vsel %vm252, %v188, %v316
    %v381 = vsel %vm253, %v189, %v317
    %v382 = vsel %vm254, %v190, %v318
    %v383 = vsel %vm255, %v191, %v319
    %v384 = vsel %vm256, %v192, %v320
    %v385 = vsel %vm257, %v193, %v321
    %v386 = vsel %vm258, %v194, %v322
    %v387 = vsel %vm259, %v195, %v323
    %v388 = vsel %vm260, %v196, %v324
    %v389 = vsel %vm261, %v197, %v325
    %v390 = vsel %vm262, %v198, %v326
    %v391 = vsel %vm263, %v199, %v327
    %v392 = vsel %vm264, %v200, %v328
    %v393 = vsel %vm265, %v201, %v329
    %v394 = vsel %vm266, %v202, %v330
    %v395 = vsel %vm267, %v203, %v331
    %v396 = vsel %vm268, %v204, %v332
    %v397 = vsel %vm269, %v205, %v333
    %v398 = vsel %vm270, %v206, %v334
    %v399 = vsel %vm271, %v207, %v335
    %v400 = vsel %vm272, %v208, %v336
    %v401 = vsel %vm273, %v209, %v337
    %v402 = vsel %vm274, %v210, %v338
    %v403 = vsel %vm275, %v211, %v339
    %v404 = vsel %vm276, %v212, %v340
    %v405 = vsel %vm277, %v213, %v341
    %v406 = vsel %vm278, %v214, %v342
    %v407 = vsel %vm279, %v215, %v343
    %v408 = vsel %vm280, %v216, %v344
    %v409 = vsel %vm281, %v217, %v345
    %v410 = vsel %vm282, %v218, %v346
    %v411 = vsel %vm283, %v219, %v347
    %v412 = vsel %vm284, %v220, %v348
    %vm413 = vcmask 64512
    %414 = vst.msk [vmem:[#allocation2] sm:$0xff] %vm413, %v349
    %415 = vst.msk [vmem:[#allocation2 + $0x8] sm:$0xff] %vm413, %v350
    %416 = vst.msk [vmem:[#allocation2 + $0x10] sm:$0xff] %vm413, %v351
    %417 = vst.msk [vmem:[#allocation2 + $0x18] sm:$0xff] %vm413, %v352
    %418 = vst.msk [vmem:[#allocation2 + $0x20] sm:$0xff] %vm413, %v353
    %419 = vst.msk [vmem:[#allocation2 + $0x28] sm:$0xff] %vm413, %v354
    %420 = vst.msk [vmem:[#allocation2 + $0x30] sm:$0xff] %vm413, %v355
    %421 = vst.msk [vmem:[#allocation2 + $0x38] sm:$0xff] %vm413, %v356
    %422 = vst.msk [vmem:[#allocation2 + $0x40] sm:$0xff] %vm413, %v357
    %423 = vst.msk [vmem:[#allocation2 + $0x48] sm:$0xff] %vm413, %v358
    %424 = vst.msk [vmem:[#allocation2 + $0x50] sm:$0xff] %vm413, %v359
    %425 = vst.msk [vmem:[#allocation2 + $0x58] sm:$0xff] %vm413, %v360
    %426 = vst.msk [vmem:[#allocation2 + $0x60] sm:$0xff] %vm413, %v361
    %427 = vst.msk [vmem:[#allocation2 + $0x68] sm:$0xff] %vm413, %v362
    %428 = vst.msk [vmem:[#allocation2 + $0x70] sm:$0xff] %vm413, %v363
    %429 = vst.msk [vmem:[#allocation2 + $0x78] sm:$0xff] %vm413, %v364
    %430 = vst.msk [vmem:[#allocation2 + $0x80] sm:$0xff] %vm413, %v365
    %431 = vst.msk [vmem:[#allocation2 + $0x88] sm:$0xff] %vm413, %v366
    %432 = vst.msk [vmem:[#allocation2 + $0x90] sm:$0xff] %vm413, %v367
    %433 = vst.msk [vmem:[#allocation2 + $0x98] sm:$0xff] %vm413, %v368
    %434 = vst.msk [vmem:[#allocation2 + $0xa0] sm:$0xff] %vm413, %v369
    %435 = vst.msk [vmem:[#allocation2 + $0xa8] sm:$0xff] %vm413, %v370
    %436 = vst.msk [vmem:[#allocation2 + $0xb0] sm:$0xff] %vm413, %v371
    %437 = vst.msk [vmem:[#allocation2 + $0xb8] sm:$0xff] %vm413, %v372
    %438 = vst.msk [vmem:[#allocation2 + $0xc0] sm:$0xff] %vm413, %v373
    %439 = vst.msk [vmem:[#allocation2 + $0xc8] sm:$0xff] %vm413, %v374
    %440 = vst.msk [vmem:[#allocation2 + $0xd0] sm:$0xff] %vm413, %v375
    %441 = vst.msk [vmem:[#allocation2 + $0xd8] sm:$0xff] %vm413, %v376
    %442 = vst.msk [vmem:[#allocation2 + $0xe0] sm:$0xff] %vm413, %v377
    %443 = vst.msk [vmem:[#allocation2 + $0xe8] sm:$0xff] %vm413, %v378
    %444 = vst.msk [vmem:[#allocation2 + $0xf0] sm:$0xff] %vm413, %v379
    %445 = vst.msk [vmem:[#allocation2 + $0xf8] sm:$0xff] %vm413, %v380
    %446 = vst.msk [vmem:[#allocation2 + $0x100] sm:$0xff] %vm413, %v381
    %447 = vst.msk [vmem:[#allocation2 + $0x108] sm:$0xff] %vm413, %v382
    %448 = vst.msk [vmem:[#allocation2 + $0x110] sm:$0xff] %vm413, %v383
    %449 = vst.msk [vmem:[#allocation2 + $0x118] sm:$0xff] %vm413, %v384
    %450 = vst.msk [vmem:[#allocation2 + $0x120] sm:$0xff] %vm413, %v385
    %451 = vst.msk [vmem:[#allocation2 + $0x128] sm:$0xff] %vm413, %v386
    %452 = vst.msk [vmem:[#allocation2 + $0x130] sm:$0xff] %vm413, %v387
    %453 = vst.msk [vmem:[#allocation2 + $0x138] sm:$0xff] %vm413, %v388
    %454 = vst.msk [vmem:[#allocation2 + $0x140] sm:$0xff] %vm413, %v389
    %455 = vst.msk [vmem:[#allocation2 + $0x148] sm:$0xff] %vm413, %v390
    %456 = vst.msk [vmem:[#allocation2 + $0x150] sm:$0xff] %vm413, %v391
    %457 = vst.msk [vmem:[#allocation2 + $0x158] sm:$0xff] %vm413, %v392
    %458 = vst.msk [vmem:[#allocation2 + $0x160] sm:$0xff] %vm413, %v393
    %459 = vst.msk [vmem:[#allocation2 + $0x168] sm:$0xff] %vm413, %v394
    %460 = vst.msk [vmem:[#allocation2 + $0x170] sm:$0xff] %vm413, %v395
    %461 = vst.msk [vmem:[#allocation2 + $0x178] sm:$0xff] %vm413, %v396
    %462 = vst.msk [vmem:[#allocation2 + $0x180] sm:$0xff] %vm413, %v397
    %463 = vst.msk [vmem:[#allocation2 + $0x188] sm:$0xff] %vm413, %v398
    %464 = vst.msk [vmem:[#allocation2 + $0x190] sm:$0xff] %vm413, %v399
    %465 = vst.msk [vmem:[#allocation2 + $0x198] sm:$0xff] %vm413, %v400
    %466 = vst.msk [vmem:[#allocation2 + $0x1a0] sm:$0xff] %vm413, %v401
    %467 = vst.msk [vmem:[#allocation2 + $0x1a8] sm:$0xff] %vm413, %v402
    %468 = vst.msk [vmem:[#allocation2 + $0x1b0] sm:$0xff] %vm413, %v403
    %469 = vst.msk [vmem:[#allocation2 + $0x1b8] sm:$0xff] %vm413, %v404
    %470 = vst.msk [vmem:[#allocation2 + $0x1c0] sm:$0xff] %vm413, %v405
    %471 = vst.msk [vmem:[#allocation2 + $0x1c8] sm:$0xff] %vm413, %v406
    %472 = vst.msk [vmem:[#allocation2 + $0x1d0] sm:$0xff] %vm413, %v407
    %473 = vst.msk [vmem:[#allocation2 + $0x1d8] sm:$0xff] %vm413, %v408
    %474 = vst.msk [vmem:[#allocation2 + $0x1e0] sm:$0xff] %vm413, %v409
    %475 = vst.msk [vmem:[#allocation2 + $0x1e8] sm:$0xff] %vm413, %v410
    %476 = vst.msk [vmem:[#allocation2 + $0x1f0] sm:$0xff] %vm413, %v411
    %477 = vst.msk [vmem:[#allocation2 + $0x1f8] sm:$0xff] %vm413, %v412
    // Predicated region
    $region14: #{metric_block.3} parent=1 // pred_check
      _
    $region15: #{metric_block.3} parent=1 // pred_check_branch
      %479 = sbr.rel (0) target = $region17
    $region16: #{metric_block.3} parent=1 // pred_region
      %s481 = ssub.s32 8192, 8192
      %482 = vsyncadd [#allocation3], %s481
      %s483 = sshll.u32 [#allocation2], 4
      %s484 = int_to_ptr.vmem [resolvable:$true] %s483
      %489 = dma.vmem_to_hbm [thread:$0]  %s484, 8192, %s3, [#allocation3], 128, 128, 8
    $region17: #{metric_block.3} parent=1 // pred_fallthru
      _
    // Predicated region
    $region18: #{metric_block.3} parent=1 // pred_check
      _
    $region19: #{metric_block.3} parent=1 // pred_check_branch
      %491 = sbr.rel (0) target = $region21
    $region20: #{metric_block.3} parent=1 // pred_region
      %492 = dma.done [#allocation3], 8192
    $region21: #{metric_block.3} parent=1 // pred_fallthru
      _
    %493 = vsyncpa [#allocation3], 1

</llo_original>
